<compile_context>
chip_gen: v7x
topology: tpu7x:2x2x1
jax: 0.10.0
libtpu: 0.0.40
codegen_flags: <defaults>
</compile_context>

<pallas_src>
import functools

import jax
import jax.numpy as jnp
from jax import lax
from jax.experimental import pallas as pl
from jax.experimental.pallas import tpu as pltpu


# ---------------------------------------------------------------------------
# In-kernel helpers: shifted "taps" of the flattened (C, H*W) image.
# tap(dy, dx)[c, i] == x[c, h + dy - 1, w + dx - 1]  (zero outside the image),
# where i = h*W + w.  All shifts are along the lane axis: dx shifts by ±1 lane
# (plus a column-validity mask, computed once and reused for all dy), dy shifts
# by ±W lanes (flat-edge zero fill handles the top/bottom halo exactly).
# ---------------------------------------------------------------------------
def _col_shift(x2d, dx, not_left, not_right):
    """y[:, i] = x2d[:, i + (dx - 1)], zeroed where the source column leaves the row."""
    if dx == 1:
        return x2d
    c, _ = x2d.shape
    z = jnp.zeros((c, 1), x2d.dtype)
    if dx == 2:  # source column w+1; invalid at w == W-1
        y = jnp.concatenate([x2d[:, 1:], z], axis=1)
        return jnp.where(not_right, y, jnp.zeros_like(y))
    # dx == 0: source column w-1; invalid at w == 0
    y = jnp.concatenate([z, x2d[:, :-1]], axis=1)
    return jnp.where(not_left, y, jnp.zeros_like(y))


def _row_shift(y2d, dy, W):
    """z[:, i] = y2d[:, i + (dy - 1) * W], zero-filled outside the flat range."""
    if dy == 1:
        return y2d
    c, _ = y2d.shape
    z = jnp.zeros((c, W), y2d.dtype)
    if dy == 2:
        return jnp.concatenate([y2d[:, W:], z], axis=1)
    return jnp.concatenate([z, y2d[:, :-W]], axis=1)


def _conv3x3_acc(x2d_bf, w_ref, not_left, not_right, W, acc_ref):
    """acc_ref <- 3x3 'same' conv of flattened x2d_bf (C, HW) with w_ref (3,3,P,C).

    bf16 operands into the MXU, f32 accumulation into the VMEM scratch.  The
    first partial is written by assignment so the scratch is never zero-filled.
    """
    for dx in range(3):
        cdx = _col_shift(x2d_bf, dx, not_left, not_right)
        part = None
        for dy in range(3):
            patch = _row_shift(cdx, dy, W)                       # (C, HW) bf16
            contrib = jnp.dot(w_ref[dy, dx], patch,              # (P, C) @ (C, HW)
                              preferred_element_type=jnp.float32)
            part = contrib if part is None else part + contrib
        if dx == 0:
            acc_ref[...] = part
        else:
            acc_ref[...] += part


def basic_block_kernel(x_ref, w1_ref, b1_ref, w2_ref, b2_ref, out_ref, acc_ref,
                       *, H, W, C, P):
    # x_ref:  (1, C, H*W) f32   (NCHW image, spatial flattened onto lanes)
    # w*_ref: (3, 3, Cout, Cin) bf16, BN scale already folded in
    # b*_ref: (Cout, 1) f32 folded BN bias
    # out_ref:(1, P, H*W) f32
    # acc_ref:(P, H*W) f32 VMEM accumulator, shared by both convs
    HW = H * W

    # Column index of each flat position (lane axis); masks for the dx taps.
    col = lax.broadcasted_iota(jnp.int32, (1, HW), 1) % W
    not_left = col >= 1            # source column w-1 is inside the image
    not_right = col <= W - 2       # source column w+1 is inside the image

    x2d = x_ref[0]                          # (C, HW) f32, lane-dense load
    x_bf = x2d.astype(jnp.bfloat16)         # bf16 into the MXU, f32 accumulation

    # ---- conv1 (bn1 scale folded into weights) + bias + relu ----
    _conv3x3_acc(x_bf, w1_ref, not_left, not_right, W, acc_ref)
    h1 = jnp.maximum(acc_ref[...] + b1_ref[...], 0.0)            # (P, HW) f32

    # ---- conv2 (bn2 scale folded into weights), reusing the accumulator ----
    _conv3x3_acc(h1.astype(jnp.bfloat16), w2_ref, not_left, not_right, W, acc_ref)

    # ---- bias + identity residual + relu (downsample=None, residual=True) ----
    out_ref[0] = jnp.maximum(acc_ref[...] + b2_ref[...] + x2d, 0.0)


# ---------------------------------------------------------------------------
# Wrapper: flat NCHW at the boundary (no transposes), BN folding, pallas_call.
# ---------------------------------------------------------------------------
def _fold_bn_params(params, eps=1e-5):
    """Fold inference-mode BN into (3,3,Cout,Cin) bf16 weights and (Cout,1) f32 bias."""
    s1 = params["gamma1"] / jnp.sqrt(params["var1"] + eps)
    b1 = params["beta1"] - params["mean1"] * s1
    s2 = params["gamma2"] / jnp.sqrt(params["var2"] + eps)
    b2 = params["beta2"] - params["mean2"] * s2
    # params["w*"] are HWIO (3,3,Cin,Cout); scale the output channel, then put
    # Cout before Cin so each tap matmul is (P, C) @ (C, HW).
    w1 = jnp.transpose(params["w1"] * s1[None, None, None, :], (0, 1, 3, 2))
    w2 = jnp.transpose(params["w2"] * s2[None, None, None, :], (0, 1, 3, 2))
    P = params["w1"].shape[-1]
    return (w1.astype(jnp.bfloat16), b1.reshape(P, 1).astype(jnp.float32),
            w2.astype(jnp.bfloat16), b2.reshape(P, 1).astype(jnp.float32))


def basic_block_forward(x_nchw, params):
    N, C, H, W = x_nchw.shape
    P = params["w1"].shape[-1]
    assert P == C, "identity residual requires planes == inplanes (downsample=None)"
    HW = H * W

    x = x_nchw.reshape(N, C, HW).astype(jnp.float32)     # free metadata reshape
    w1f, b1, w2f, b2 = _fold_bn_params(params)

    kernel = functools.partial(basic_block_kernel, H=H, W=W, C=C, P=P)

    flops = 2 * (2 * N * HW * 9 * C * P)                 # two 3x3 convs
    bytes_accessed = (x.size * 4 + N * HW * P * 4
                      + w1f.size * 2 + w2f.size * 2 + 2 * P * 4)

    out = pl.pallas_call(
        kernel,
        out_shape=jax.ShapeDtypeStruct((N, P, HW), jnp.float32),
        grid=(N,),
        in_specs=[
            pl.BlockSpec((1, C, HW), lambda n: (n, 0, 0)),        # x (flat NCHW)
            pl.BlockSpec((3, 3, P, C), lambda n: (0, 0, 0, 0)),   # conv1 w (bn1 folded)
            pl.BlockSpec((P, 1), lambda n: (0, 0)),               # bn1 bias
            pl.BlockSpec((3, 3, P, P), lambda n: (0, 0, 0, 0)),   # conv2 w (bn2 folded)
            pl.BlockSpec((P, 1), lambda n: (0, 0)),               # bn2 bias
        ],
        out_specs=pl.BlockSpec((1, P, HW), lambda n: (n, 0, 0)),
        scratch_shapes=[pltpu.VMEM((P, HW), jnp.float32)],        # shared f32 accumulator
        compiler_params=pltpu.CompilerParams(
            dimension_semantics=("parallel",),
            vmem_limit_bytes=32 * 1024 * 1024,
        ),
        cost_estimate=pl.CostEstimate(flops=flops, transcendentals=0,
                                      bytes_accessed=bytes_accessed),
    )(x, w1f, b1, w2f, b2)

    return out.reshape(N, P, H, W)                        # stays NCHW end-to-end


# ---------------------------------------------------------------------------
# References for correctness checking.
# ---------------------------------------------------------------------------
def basic_block_reference_f32(x_nchw, params, eps=1e-5):
    """Pure-f32 module semantics (conv -> BN -> relu -> conv -> BN -> +x -> relu)."""
    x = jnp.transpose(x_nchw, (0, 2, 3, 1)).astype(jnp.float32)

    def conv(inp, w):
        return lax.conv_general_dilated(
            inp, w, window_strides=(1, 1), padding=((1, 1), (1, 1)),
            dimension_numbers=("NHWC", "HWIO", "NHWC"))

    def bn(t, g, b, m, v):
        return (t - m) / jnp.sqrt(v + eps) * g + b

    h = jax.nn.relu(bn(conv(x, params["w1"]), params["gamma1"], params["beta1"],
                       params["mean1"], params["var1"]))
    h = bn(conv(h, params["w2"]), params["gamma2"], params["beta2"],
           params["mean2"], params["var2"])
    h = jax.nn.relu(h + x)
    return jnp.transpose(h, (0, 3, 1, 2))


def basic_block_reference_bf16(x_nchw, params, eps=1e-5):
    """Numerically matches the kernel path: folded BN, bf16 conv operands, f32 accum."""
    x = jnp.transpose(x_nchw, (0, 2, 3, 1)).astype(jnp.float32)
    s1 = params["gamma1"] / jnp.sqrt(params["var1"] + eps)
    b1 = params["beta1"] - params["mean1"] * s1
    s2 = params["gamma2"] / jnp.sqrt(params["var2"] + eps)
    b2 = params["beta2"] - params["mean2"] * s2
    w1f = (params["w1"] * s1[None, None, None, :]).astype(jnp.bfloat16)
    w2f = (params["w2"] * s2[None, None, None, :]).astype(jnp.bfloat16)

    def conv(inp_bf, w_bf):
        return lax.conv_general_dilated(
            inp_bf, w_bf, window_strides=(1, 1), padding=((1, 1), (1, 1)),
            dimension_numbers=("NHWC", "HWIO", "NHWC"),
            preferred_element_type=jnp.float32)

    h1 = jax.nn.relu(conv(x.astype(jnp.bfloat16), w1f) + b1.reshape(1, 1, 1, -1))
    out = conv(h1.astype(jnp.bfloat16), w2f) + b2.reshape(1, 1, 1, -1) + x
    out = jax.nn.relu(out)
    return jnp.transpose(out, (0, 3, 1, 2))


if __name__ == "__main__":
    # Small shapes consistent with the module: NCHW input, inplanes == planes.
    N, C, H, W = 2, 4, 16, 16
    P = C  # planes

    key = jax.random.PRNGKey(0)
    ks = jax.random.split(key, 11)
    params = {
        # Conv weights kept in HWIO (kh, kw, cin, cout).
        "w1": 0.1 * jax.random.normal(ks[0], (3, 3, C, P), jnp.float32),
        "w2": 0.1 * jax.random.normal(ks[1], (3, 3, P, P), jnp.float32),
        # BatchNorm affine params + running stats (inference mode).
        "gamma1": 1.0 + 0.1 * jax.random.normal(ks[2], (P,), jnp.float32),
        "beta1": 0.1 * jax.random.normal(ks[3], (P,), jnp.float32),
        "mean1": 0.1 * jax.random.normal(ks[4], (P,), jnp.float32),
        "var1": jax.random.uniform(ks[5], (P,), jnp.float32, 0.5, 1.5),
        "gamma2": 1.0 + 0.1 * jax.random.normal(ks[6], (P,), jnp.float32),
        "beta2": 0.1 * jax.random.normal(ks[7], (P,), jnp.float32),
        "mean2": 0.1 * jax.random.normal(ks[8], (P,), jnp.float32),
        "var2": jax.random.uniform(ks[9], (P,), jnp.float32, 0.5, 1.5),
    }
    x = jax.random.normal(ks[10], (N, C, H, W), jnp.float32)

    out = basic_block_forward(x, params)
    jax.block_until_ready(out)
    assert out.shape == (N, P, H, W)

    # Strict check vs. a reference that mirrors the kernel's numerics
    # (folded BN, bf16 conv operands, f32 accumulation).
    ref_bf16 = basic_block_reference_bf16(x, params)
    assert jnp.allclose(out, ref_bf16, atol=5e-3, rtol=5e-3), \
        "mismatch vs bf16-matched JAX reference"

    # Loose check vs. the full-f32 module semantics (bf16 MXU rounding only).
    ref_f32 = basic_block_reference_f32(x, params)
    assert jnp.allclose(out, ref_f32, atol=5e-2, rtol=5e-2), \
        "mismatch vs f32 JAX reference"

    print("KERNEL_OK")
</pallas_src>

<mosaic_0001>
module attributes {stable_mosaic.version = 11 : i64} {
  func.func @basic_block_kernel(%arg0: i32, %arg1: memref<1x4x256xf32, #tpu.memory_space<vmem>>, %arg2: memref<3x3x4x4xbf16, #tpu.memory_space<vmem>>, %arg3: memref<4x1xf32, #tpu.memory_space<vmem>>, %arg4: memref<3x3x4x4xbf16, #tpu.memory_space<vmem>>, %arg5: memref<4x1xf32, #tpu.memory_space<vmem>>, %arg6: memref<1x4x256xf32, #tpu.memory_space<vmem>>, %arg7: memref<4x256xf32, #tpu.memory_space<vmem>>) attributes {dimension_semantics = [#tpu.dimension_semantics<parallel>], iteration_bounds = array<i64: 2>, scalar_prefetch = 0 : i64, scratch_operands = 1 : i64, tpu.core_type = #tpu.core_type<tc>, window_params = [{transform_indices = @transform_0, window_bounds = array<i64: 1, 4, 256>}, {pipeline_mode = #tpu.pipeline_mode<synchronous>, transform_indices = @transform_1, window_bounds = array<i64: 3, 3, 4, 4>}, {pipeline_mode = #tpu.pipeline_mode<synchronous>, transform_indices = @transform_2, window_bounds = array<i64: 4, 1>}, {pipeline_mode = #tpu.pipeline_mode<synchronous>, transform_indices = @transform_3, window_bounds = array<i64: 3, 3, 4, 4>}, {pipeline_mode = #tpu.pipeline_mode<synchronous>, transform_indices = @transform_4, window_bounds = array<i64: 4, 1>}, {transform_indices = @transform_5, window_bounds = array<i64: 1, 4, 256>}]} {
    %0 = tpu.iota {dimensions = array<i32: 1>} : vector<1x256xi32>
    %c16_i32 = arith.constant 16 : i32
    %c0_i32 = arith.constant 0 : i32
    %1 = arith.cmpi eq, %c16_i32, %c0_i32 : i32
    %c1_i32 = arith.constant 1 : i32
    %2 = arith.select %1, %c1_i32, %c16_i32 : i32
    %3 = vector.broadcast %2 : i32 to vector<1x256xi32>
    %4 = arith.remsi %0, %3 : vector<1x256xi32>
    %c0_i32_0 = arith.constant 0 : i32
    %5 = vector.broadcast %c0_i32_0 : i32 to vector<1x256xi32>
    %6 = arith.cmpi ne, %4, %5 : vector<1x256xi32>
    %c0_i32_1 = arith.constant 0 : i32
    %7 = vector.broadcast %c0_i32_1 : i32 to vector<1x256xi32>
    %8 = arith.cmpi slt, %4, %7 : vector<1x256xi32>
    %c0_i32_2 = arith.constant 0 : i32
    %9 = arith.cmpi slt, %2, %c0_i32_2 : i32
    %10 = vector.broadcast %9 : i1 to vector<1x256xi1>
    %11 = vector.broadcast %10 : vector<1x256xi1> to vector<1x256xi1>
    %12 = arith.xori %8, %11 : vector<1x256xi1>
    %13 = arith.andi %12, %6 : vector<1x256xi1>
    %14 = vector.broadcast %2 : i32 to vector<1x256xi32>
    %15 = arith.addi %4, %14 : vector<1x256xi32>
    %16 = arith.select %13, %15, %4 : vector<1x256xi1>, vector<1x256xi32>
    %c1_i32_3 = arith.constant 1 : i32
    %17 = vector.broadcast %c1_i32_3 : i32 to vector<1x256xi32>
    %18 = arith.cmpi sge, %16, %17 : vector<1x256xi32>
    %c14_i32 = arith.constant 14 : i32
    %19 = vector.broadcast %c14_i32 : i32 to vector<1x256xi32>
    %20 = arith.cmpi sle, %16, %19 : vector<1x256xi32>
    %c0 = arith.constant 0 : index
    %c0_4 = arith.constant 0 : index
    %c0_5 = arith.constant 0 : index
    %21 = vector.load %arg1[%c0, %c0_4, %c0_5] : memref<1x4x256xf32, #tpu.memory_space<vmem>>, vector<1x4x256xf32>
    %22 = vector.shape_cast %21 : vector<1x4x256xf32> to vector<4x256xf32>
    %23 = arith.truncf %22 : vector<4x256xf32> to vector<4x256xbf16>
    %cst = arith.constant 0.000000e+00 : bf16
    %24 = vector.broadcast %cst : bf16 to vector<4x1xbf16>
    %25 = vector.extract_strided_slice %23 {offsets = [0, 0], sizes = [4, 255], strides = [1, 1]} : vector<4x256xbf16> to vector<4x255xbf16>
    %26 = tpu.concatenate %24, %25 in 1 : vector<4x1xbf16>, vector<4x255xbf16> -> vector<4x256xbf16>
    %cst_6 = arith.constant 0.000000e+00 : bf16
    %27 = vector.broadcast %cst_6 : bf16 to vector<4x256xbf16>
    %28 = vector.shape_cast %18 : vector<1x256xi1> to vector<1x256xi1>
    %29 = vector.broadcast %28 : vector<1x256xi1> to vector<4x256xi1>
    %30 = arith.select %29, %26, %27 : vector<4x256xi1>, vector<4x256xbf16>
    %cst_7 = arith.constant 0.000000e+00 : bf16
    %31 = vector.broadcast %cst_7 : bf16 to vector<4x16xbf16>
    %32 = vector.extract_strided_slice %30 {offsets = [0, 0], sizes = [4, 240], strides = [1, 1]} : vector<4x256xbf16> to vector<4x240xbf16>
    %33 = tpu.concatenate %31, %32 in 1 : vector<4x16xbf16>, vector<4x240xbf16> -> vector<4x256xbf16>
    %c0_8 = arith.constant 0 : index
    %c0_9 = arith.constant 0 : index
    %c0_10 = arith.constant 0 : index
    %c0_11 = arith.constant 0 : index
    %34 = vector.load %arg2[%c0_8, %c0_9, %c0_10, %c0_11] : memref<3x3x4x4xbf16, #tpu.memory_space<vmem>>, vector<1x1x4x4xbf16>
    %35 = vector.shape_cast %34 : vector<1x1x4x4xbf16> to vector<4x4xbf16>
    %cst_12 = arith.constant dense<0.000000e+00> : vector<4x256xf32>
    %36 = tpu.matmul %35, %33, %cst_12 {dimension_numbers = #tpu.dot_dimension_numbers<[1], [0], [0], [1], [0, 0, 1, 1], [], []>} : vector<4x4xbf16>, vector<4x256xbf16>, vector<4x256xf32> -> vector<4x256xf32>
    %c1 = arith.constant 1 : index
    %c0_13 = arith.constant 0 : index
    %c0_14 = arith.constant 0 : index
    %c0_15 = arith.constant 0 : index
    %37 = vector.load %arg2[%c1, %c0_13, %c0_14, %c0_15] : memref<3x3x4x4xbf16, #tpu.memory_space<vmem>>, vector<1x1x4x4xbf16>
    %38 = vector.shape_cast %37 : vector<1x1x4x4xbf16> to vector<4x4xbf16>
    %cst_16 = arith.constant dense<0.000000e+00> : vector<4x256xf32>
    %39 = tpu.matmul %38, %30, %cst_16 {dimension_numbers = #tpu.dot_dimension_numbers<[1], [0], [0], [1], [0, 0, 1, 1], [], []>} : vector<4x4xbf16>, vector<4x256xbf16>, vector<4x256xf32> -> vector<4x256xf32>
    %40 = arith.addf %36, %39 : vector<4x256xf32>
    %cst_17 = arith.constant 0.000000e+00 : bf16
    %41 = vector.broadcast %cst_17 : bf16 to vector<4x16xbf16>
    %42 = vector.extract_strided_slice %30 {offsets = [0, 16], sizes = [4, 240], strides = [1, 1]} : vector<4x256xbf16> to vector<4x240xbf16>
    %43 = tpu.concatenate %42, %41 in 1 : vector<4x240xbf16>, vector<4x16xbf16> -> vector<4x256xbf16>
    %c2 = arith.constant 2 : index
    %c0_18 = arith.constant 0 : index
    %c0_19 = arith.constant 0 : index
    %c0_20 = arith.constant 0 : index
    %44 = vector.load %arg2[%c2, %c0_18, %c0_19, %c0_20] : memref<3x3x4x4xbf16, #tpu.memory_space<vmem>>, vector<1x1x4x4xbf16>
    %45 = vector.shape_cast %44 : vector<1x1x4x4xbf16> to vector<4x4xbf16>
    %cst_21 = arith.constant dense<0.000000e+00> : vector<4x256xf32>
    %46 = tpu.matmul %45, %43, %cst_21 {dimension_numbers = #tpu.dot_dimension_numbers<[1], [0], [0], [1], [0, 0, 1, 1], [], []>} : vector<4x4xbf16>, vector<4x256xbf16>, vector<4x256xf32> -> vector<4x256xf32>
    %47 = arith.addf %40, %46 : vector<4x256xf32>
    %c0_22 = arith.constant 0 : index
    %c0_23 = arith.constant 0 : index
    %48 = vector.load %arg7[%c0_22, %c0_23] : memref<4x256xf32, #tpu.memory_space<vmem>>, vector<4x256xf32>
    tpu.vector_store %arg7[%c0_22, %c0_23], %47 {strides = array<i32>} : memref<4x256xf32, #tpu.memory_space<vmem>>, vector<4x256xf32>,
    %cst_24 = arith.constant 0.000000e+00 : bf16
    %49 = vector.broadcast %cst_24 : bf16 to vector<4x16xbf16>
    %50 = vector.extract_strided_slice %23 {offsets = [0, 0], sizes = [4, 240], strides = [1, 1]} : vector<4x256xbf16> to vector<4x240xbf16>
    %51 = tpu.concatenate %49, %50 in 1 : vector<4x16xbf16>, vector<4x240xbf16> -> vector<4x256xbf16>
    %c0_25 = arith.constant 0 : index
    %c1_26 = arith.constant 1 : index
    %c0_27 = arith.constant 0 : index
    %c0_28 = arith.constant 0 : index
    %52 = vector.load %arg2[%c0_25, %c1_26, %c0_27, %c0_28] : memref<3x3x4x4xbf16, #tpu.memory_space<vmem>>, vector<1x1x4x4xbf16>
    %53 = vector.shape_cast %52 : vector<1x1x4x4xbf16> to vector<4x4xbf16>
    %cst_29 = arith.constant dense<0.000000e+00> : vector<4x256xf32>
    %54 = tpu.matmul %53, %51, %cst_29 {dimension_numbers = #tpu.dot_dimension_numbers<[1], [0], [0], [1], [0, 0, 1, 1], [], []>} : vector<4x4xbf16>, vector<4x256xbf16>, vector<4x256xf32> -> vector<4x256xf32>
    %c1_30 = arith.constant 1 : index
    %c1_31 = arith.constant 1 : index
    %c0_32 = arith.constant 0 : index
    %c0_33 = arith.constant 0 : index
    %55 = vector.load %arg2[%c1_30, %c1_31, %c0_32, %c0_33] : memref<3x3x4x4xbf16, #tpu.memory_space<vmem>>, vector<1x1x4x4xbf16>
    %56 = vector.shape_cast %55 : vector<1x1x4x4xbf16> to vector<4x4xbf16>
    %cst_34 = arith.constant dense<0.000000e+00> : vector<4x256xf32>
    %57 = tpu.matmul %56, %23, %cst_34 {dimension_numbers = #tpu.dot_dimension_numbers<[1], [0], [0], [1], [0, 0, 1, 1], [], []>} : vector<4x4xbf16>, vector<4x256xbf16>, vector<4x256xf32> -> vector<4x256xf32>
    %58 = arith.addf %54, %57 : vector<4x256xf32>
    %cst_35 = arith.constant 0.000000e+00 : bf16
    %59 = vector.broadcast %cst_35 : bf16 to vector<4x16xbf16>
    %60 = vector.extract_strided_slice %23 {offsets = [0, 16], sizes = [4, 240], strides = [1, 1]} : vector<4x256xbf16> to vector<4x240xbf16>
    %61 = tpu.concatenate %60, %59 in 1 : vector<4x240xbf16>, vector<4x16xbf16> -> vector<4x256xbf16>
    %c2_36 = arith.constant 2 : index
    %c1_37 = arith.constant 1 : index
    %c0_38 = arith.constant 0 : index
    %c0_39 = arith.constant 0 : index
    %62 = vector.load %arg2[%c2_36, %c1_37, %c0_38, %c0_39] : memref<3x3x4x4xbf16, #tpu.memory_space<vmem>>, vector<1x1x4x4xbf16>
    %63 = vector.shape_cast %62 : vector<1x1x4x4xbf16> to vector<4x4xbf16>
    %cst_40 = arith.constant dense<0.000000e+00> : vector<4x256xf32>
    %64 = tpu.matmul %63, %61, %cst_40 {dimension_numbers = #tpu.dot_dimension_numbers<[1], [0], [0], [1], [0, 0, 1, 1], [], []>} : vector<4x4xbf16>, vector<4x256xbf16>, vector<4x256xf32> -> vector<4x256xf32>
    %65 = arith.addf %58, %64 : vector<4x256xf32>
    %c0_41 = arith.constant 0 : index
    %c0_42 = arith.constant 0 : index
    %66 = vector.load %arg7[%c0_41, %c0_42] : memref<4x256xf32, #tpu.memory_space<vmem>>, vector<4x256xf32>
    %67 = arith.addf %66, %65 : vector<4x256xf32>
    %c0_43 = arith.constant 0 : index
    %c0_44 = arith.constant 0 : index
    %68 = vector.load %arg7[%c0_43, %c0_44] : memref<4x256xf32, #tpu.memory_space<vmem>>, vector<4x256xf32>
    tpu.vector_store %arg7[%c0_43, %c0_44], %67 {strides = array<i32>} : memref<4x256xf32, #tpu.memory_space<vmem>>, vector<4x256xf32>,
    %cst_45 = arith.constant 0.000000e+00 : bf16
    %69 = vector.broadcast %cst_45 : bf16 to vector<4x1xbf16>
    %70 = vector.extract_strided_slice %23 {offsets = [0, 1], sizes = [4, 255], strides = [1, 1]} : vector<4x256xbf16> to vector<4x255xbf16>
    %71 = tpu.concatenate %70, %69 in 1 : vector<4x255xbf16>, vector<4x1xbf16> -> vector<4x256xbf16>
    %cst_46 = arith.constant 0.000000e+00 : bf16
    %72 = vector.broadcast %cst_46 : bf16 to vector<4x256xbf16>
    %73 = vector.shape_cast %20 : vector<1x256xi1> to vector<1x256xi1>
    %74 = vector.broadcast %73 : vector<1x256xi1> to vector<4x256xi1>
    %75 = arith.select %74, %71, %72 : vector<4x256xi1>, vector<4x256xbf16>
    %cst_47 = arith.constant 0.000000e+00 : bf16
    %76 = vector.broadcast %cst_47 : bf16 to vector<4x16xbf16>
    %77 = vector.extract_strided_slice %75 {offsets = [0, 0], sizes = [4, 240], strides = [1, 1]} : vector<4x256xbf16> to vector<4x240xbf16>
    %78 = tpu.concatenate %76, %77 in 1 : vector<4x16xbf16>, vector<4x240xbf16> -> vector<4x256xbf16>
    %c0_48 = arith.constant 0 : index
    %c2_49 = arith.constant 2 : index
    %c0_50 = arith.constant 0 : index
    %c0_51 = arith.constant 0 : index
    %79 = vector.load %arg2[%c0_48, %c2_49, %c0_50, %c0_51] : memref<3x3x4x4xbf16, #tpu.memory_space<vmem>>, vector<1x1x4x4xbf16>
    %80 = vector.shape_cast %79 : vector<1x1x4x4xbf16> to vector<4x4xbf16>
    %cst_52 = arith.constant dense<0.000000e+00> : vector<4x256xf32>
    %81 = tpu.matmul %80, %78, %cst_52 {dimension_numbers = #tpu.dot_dimension_numbers<[1], [0], [0], [1], [0, 0, 1, 1], [], []>} : vector<4x4xbf16>, vector<4x256xbf16>, vector<4x256xf32> -> vector<4x256xf32>
    %c1_53 = arith.constant 1 : index
    %c2_54 = arith.constant 2 : index
    %c0_55 = arith.constant 0 : index
    %c0_56 = arith.constant 0 : index
    %82 = vector.load %arg2[%c1_53, %c2_54, %c0_55, %c0_56] : memref<3x3x4x4xbf16, #tpu.memory_space<vmem>>, vector<1x1x4x4xbf16>
    %83 = vector.shape_cast %82 : vector<1x1x4x4xbf16> to vector<4x4xbf16>
    %cst_57 = arith.constant dense<0.000000e+00> : vector<4x256xf32>
    %84 = tpu.matmul %83, %75, %cst_57 {dimension_numbers = #tpu.dot_dimension_numbers<[1], [0], [0], [1], [0, 0, 1, 1], [], []>} : vector<4x4xbf16>, vector<4x256xbf16>, vector<4x256xf32> -> vector<4x256xf32>
    %85 = arith.addf %81, %84 : vector<4x256xf32>
    %cst_58 = arith.constant 0.000000e+00 : bf16
    %86 = vector.broadcast %cst_58 : bf16 to vector<4x16xbf16>
    %87 = vector.extract_strided_slice %75 {offsets = [0, 16], sizes = [4, 240], strides = [1, 1]} : vector<4x256xbf16> to vector<4x240xbf16>
    %88 = tpu.concatenate %87, %86 in 1 : vector<4x240xbf16>, vector<4x16xbf16> -> vector<4x256xbf16>
    %c2_59 = arith.constant 2 : index
    %c2_60 = arith.constant 2 : index
    %c0_61 = arith.constant 0 : index
    %c0_62 = arith.constant 0 : index
    %89 = vector.load %arg2[%c2_59, %c2_60, %c0_61, %c0_62] : memref<3x3x4x4xbf16, #tpu.memory_space<vmem>>, vector<1x1x4x4xbf16>
    %90 = vector.shape_cast %89 : vector<1x1x4x4xbf16> to vector<4x4xbf16>
    %cst_63 = arith.constant dense<0.000000e+00> : vector<4x256xf32>
    %91 = tpu.matmul %90, %88, %cst_63 {dimension_numbers = #tpu.dot_dimension_numbers<[1], [0], [0], [1], [0, 0, 1, 1], [], []>} : vector<4x4xbf16>, vector<4x256xbf16>, vector<4x256xf32> -> vector<4x256xf32>
    %92 = arith.addf %85, %91 : vector<4x256xf32>
    %c0_64 = arith.constant 0 : index
    %c0_65 = arith.constant 0 : index
    %93 = vector.load %arg7[%c0_64, %c0_65] : memref<4x256xf32, #tpu.memory_space<vmem>>, vector<4x256xf32>
    %94 = arith.addf %93, %92 : vector<4x256xf32>
    %c0_66 = arith.constant 0 : index
    %c0_67 = arith.constant 0 : index
    %95 = vector.load %arg7[%c0_66, %c0_67] : memref<4x256xf32, #tpu.memory_space<vmem>>, vector<4x256xf32>
    tpu.vector_store %arg7[%c0_66, %c0_67], %94 {strides = array<i32>} : memref<4x256xf32, #tpu.memory_space<vmem>>, vector<4x256xf32>,
    %c0_68 = arith.constant 0 : index
    %c0_69 = arith.constant 0 : index
    %96 = vector.load %arg7[%c0_68, %c0_69] : memref<4x256xf32, #tpu.memory_space<vmem>>, vector<4x256xf32>
    %c0_70 = arith.constant 0 : index
    %c0_71 = arith.constant 0 : index
    %97 = vector.load %arg3[%c0_70, %c0_71] : memref<4x1xf32, #tpu.memory_space<vmem>>, vector<4x1xf32>
    %98 = vector.broadcast %97 : vector<4x1xf32> to vector<4x256xf32>
    %99 = arith.addf %96, %98 : vector<4x256xf32>
    %cst_72 = arith.constant 0.000000e+00 : f32
    %100 = vector.broadcast %cst_72 : f32 to vector<4x256xf32>
    %101 = arith.maximumf %99, %100 : vector<4x256xf32>
    %102 = arith.truncf %101 : vector<4x256xf32> to vector<4x256xbf16>
    %cst_73 = arith.constant 0.000000e+00 : bf16
    %103 = vector.broadcast %cst_73 : bf16 to vector<4x1xbf16>
    %104 = vector.extract_strided_slice %102 {offsets = [0, 0], sizes = [4, 255], strides = [1, 1]} : vector<4x256xbf16> to vector<4x255xbf16>
    %105 = tpu.concatenate %103, %104 in 1 : vector<4x1xbf16>, vector<4x255xbf16> -> vector<4x256xbf16>
    %cst_74 = arith.constant 0.000000e+00 : bf16
    %106 = vector.broadcast %cst_74 : bf16 to vector<4x256xbf16>
    %107 = vector.shape_cast %18 : vector<1x256xi1> to vector<1x256xi1>
    %108 = vector.broadcast %107 : vector<1x256xi1> to vector<4x256xi1>
    %109 = arith.select %108, %105, %106 : vector<4x256xi1>, vector<4x256xbf16>
    %cst_75 = arith.constant 0.000000e+00 : bf16
    %110 = vector.broadcast %cst_75 : bf16 to vector<4x16xbf16>
    %111 = vector.extract_strided_slice %109 {offsets = [0, 0], sizes = [4, 240], strides = [1, 1]} : vector<4x256xbf16> to vector<4x240xbf16>
    %112 = tpu.concatenate %110, %111 in 1 : vector<4x16xbf16>, vector<4x240xbf16> -> vector<4x256xbf16>
    %c0_76 = arith.constant 0 : index
    %c0_77 = arith.constant 0 : index
    %c0_78 = arith.constant 0 : index
    %c0_79 = arith.constant 0 : index
    %113 = vector.load %arg4[%c0_76, %c0_77, %c0_78, %c0_79] : memref<3x3x4x4xbf16, #tpu.memory_space<vmem>>, vector<1x1x4x4xbf16>
    %114 = vector.shape_cast %113 : vector<1x1x4x4xbf16> to vector<4x4xbf16>
    %cst_80 = arith.constant dense<0.000000e+00> : vector<4x256xf32>
    %115 = tpu.matmul %114, %112, %cst_80 {dimension_numbers = #tpu.dot_dimension_numbers<[1], [0], [0], [1], [0, 0, 1, 1], [], []>} : vector<4x4xbf16>, vector<4x256xbf16>, vector<4x256xf32> -> vector<4x256xf32>
    %c1_81 = arith.constant 1 : index
    %c0_82 = arith.constant 0 : index
    %c0_83 = arith.constant 0 : index
    %c0_84 = arith.constant 0 : index
    %116 = vector.load %arg4[%c1_81, %c0_82, %c0_83, %c0_84] : memref<3x3x4x4xbf16, #tpu.memory_space<vmem>>, vector<1x1x4x4xbf16>
    %117 = vector.shape_cast %116 : vector<1x1x4x4xbf16> to vector<4x4xbf16>
    %cst_85 = arith.constant dense<0.000000e+00> : vector<4x256xf32>
    %118 = tpu.matmul %117, %109, %cst_85 {dimension_numbers = #tpu.dot_dimension_numbers<[1], [0], [0], [1], [0, 0, 1, 1], [], []>} : vector<4x4xbf16>, vector<4x256xbf16>, vector<4x256xf32> -> vector<4x256xf32>
    %119 = arith.addf %115, %118 : vector<4x256xf32>
    %cst_86 = arith.constant 0.000000e+00 : bf16
    %120 = vector.broadcast %cst_86 : bf16 to vector<4x16xbf16>
    %121 = vector.extract_strided_slice %109 {offsets = [0, 16], sizes = [4, 240], strides = [1, 1]} : vector<4x256xbf16> to vector<4x240xbf16>
    %122 = tpu.concatenate %121, %120 in 1 : vector<4x240xbf16>, vector<4x16xbf16> -> vector<4x256xbf16>
    %c2_87 = arith.constant 2 : index
    %c0_88 = arith.constant 0 : index
    %c0_89 = arith.constant 0 : index
    %c0_90 = arith.constant 0 : index
    %123 = vector.load %arg4[%c2_87, %c0_88, %c0_89, %c0_90] : memref<3x3x4x4xbf16, #tpu.memory_space<vmem>>, vector<1x1x4x4xbf16>
    %124 = vector.shape_cast %123 : vector<1x1x4x4xbf16> to vector<4x4xbf16>
    %cst_91 = arith.constant dense<0.000000e+00> : vector<4x256xf32>
    %125 = tpu.matmul %124, %122, %cst_91 {dimension_numbers = #tpu.dot_dimension_numbers<[1], [0], [0], [1], [0, 0, 1, 1], [], []>} : vector<4x4xbf16>, vector<4x256xbf16>, vector<4x256xf32> -> vector<4x256xf32>
    %126 = arith.addf %119, %125 : vector<4x256xf32>
    %c0_92 = arith.constant 0 : index
    %c0_93 = arith.constant 0 : index
    %127 = vector.load %arg7[%c0_92, %c0_93] : memref<4x256xf32, #tpu.memory_space<vmem>>, vector<4x256xf32>
    tpu.vector_store %arg7[%c0_92, %c0_93], %126 {strides = array<i32>} : memref<4x256xf32, #tpu.memory_space<vmem>>, vector<4x256xf32>,
    %cst_94 = arith.constant 0.000000e+00 : bf16
    %128 = vector.broadcast %cst_94 : bf16 to vector<4x16xbf16>
    %129 = vector.extract_strided_slice %102 {offsets = [0, 0], sizes = [4, 240], strides = [1, 1]} : vector<4x256xbf16> to vector<4x240xbf16>
    %130 = tpu.concatenate %128, %129 in 1 : vector<4x16xbf16>, vector<4x240xbf16> -> vector<4x256xbf16>
    %c0_95 = arith.constant 0 : index
    %c1_96 = arith.constant 1 : index
    %c0_97 = arith.constant 0 : index
    %c0_98 = arith.constant 0 : index
    %131 = vector.load %arg4[%c0_95, %c1_96, %c0_97, %c0_98] : memref<3x3x4x4xbf16, #tpu.memory_space<vmem>>, vector<1x1x4x4xbf16>
    %132 = vector.shape_cast %131 : vector<1x1x4x4xbf16> to vector<4x4xbf16>
    %cst_99 = arith.constant dense<0.000000e+00> : vector<4x256xf32>
    %133 = tpu.matmul %132, %130, %cst_99 {dimension_numbers = #tpu.dot_dimension_numbers<[1], [0], [0], [1], [0, 0, 1, 1], [], []>} : vector<4x4xbf16>, vector<4x256xbf16>, vector<4x256xf32> -> vector<4x256xf32>
    %c1_100 = arith.constant 1 : index
    %c1_101 = arith.constant 1 : index
    %c0_102 = arith.constant 0 : index
    %c0_103 = arith.constant 0 : index
    %134 = vector.load %arg4[%c1_100, %c1_101, %c0_102, %c0_103] : memref<3x3x4x4xbf16, #tpu.memory_space<vmem>>, vector<1x1x4x4xbf16>
    %135 = vector.shape_cast %134 : vector<1x1x4x4xbf16> to vector<4x4xbf16>
    %cst_104 = arith.constant dense<0.000000e+00> : vector<4x256xf32>
    %136 = tpu.matmul %135, %102, %cst_104 {dimension_numbers = #tpu.dot_dimension_numbers<[1], [0], [0], [1], [0, 0, 1, 1], [], []>} : vector<4x4xbf16>, vector<4x256xbf16>, vector<4x256xf32> -> vector<4x256xf32>
    %137 = arith.addf %133, %136 : vector<4x256xf32>
    %cst_105 = arith.constant 0.000000e+00 : bf16
    %138 = vector.broadcast %cst_105 : bf16 to vector<4x16xbf16>
    %139 = vector.extract_strided_slice %102 {offsets = [0, 16], sizes = [4, 240], strides = [1, 1]} : vector<4x256xbf16> to vector<4x240xbf16>
    %140 = tpu.concatenate %139, %138 in 1 : vector<4x240xbf16>, vector<4x16xbf16> -> vector<4x256xbf16>
    %c2_106 = arith.constant 2 : index
    %c1_107 = arith.constant 1 : index
    %c0_108 = arith.constant 0 : index
    %c0_109 = arith.constant 0 : index
    %141 = vector.load %arg4[%c2_106, %c1_107, %c0_108, %c0_109] : memref<3x3x4x4xbf16, #tpu.memory_space<vmem>>, vector<1x1x4x4xbf16>
    %142 = vector.shape_cast %141 : vector<1x1x4x4xbf16> to vector<4x4xbf16>
    %cst_110 = arith.constant dense<0.000000e+00> : vector<4x256xf32>
    %143 = tpu.matmul %142, %140, %cst_110 {dimension_numbers = #tpu.dot_dimension_numbers<[1], [0], [0], [1], [0, 0, 1, 1], [], []>} : vector<4x4xbf16>, vector<4x256xbf16>, vector<4x256xf32> -> vector<4x256xf32>
    %144 = arith.addf %137, %143 : vector<4x256xf32>
    %c0_111 = arith.constant 0 : index
    %c0_112 = arith.constant 0 : index
    %145 = vector.load %arg7[%c0_111, %c0_112] : memref<4x256xf32, #tpu.memory_space<vmem>>, vector<4x256xf32>
    %146 = arith.addf %145, %144 : vector<4x256xf32>
    %c0_113 = arith.constant 0 : index
    %c0_114 = arith.constant 0 : index
    %147 = vector.load %arg7[%c0_113, %c0_114] : memref<4x256xf32, #tpu.memory_space<vmem>>, vector<4x256xf32>
    tpu.vector_store %arg7[%c0_113, %c0_114], %146 {strides = array<i32>} : memref<4x256xf32, #tpu.memory_space<vmem>>, vector<4x256xf32>,
    %cst_115 = arith.constant 0.000000e+00 : bf16
    %148 = vector.broadcast %cst_115 : bf16 to vector<4x1xbf16>
    %149 = vector.extract_strided_slice %102 {offsets = [0, 1], sizes = [4, 255], strides = [1, 1]} : vector<4x256xbf16> to vector<4x255xbf16>
    %150 = tpu.concatenate %149, %148 in 1 : vector<4x255xbf16>, vector<4x1xbf16> -> vector<4x256xbf16>
    %cst_116 = arith.constant 0.000000e+00 : bf16
    %151 = vector.broadcast %cst_116 : bf16 to vector<4x256xbf16>
    %152 = vector.shape_cast %20 : vector<1x256xi1> to vector<1x256xi1>
    %153 = vector.broadcast %152 : vector<1x256xi1> to vector<4x256xi1>
    %154 = arith.select %153, %150, %151 : vector<4x256xi1>, vector<4x256xbf16>
    %cst_117 = arith.constant 0.000000e+00 : bf16
    %155 = vector.broadcast %cst_117 : bf16 to vector<4x16xbf16>
    %156 = vector.extract_strided_slice %154 {offsets = [0, 0], sizes = [4, 240], strides = [1, 1]} : vector<4x256xbf16> to vector<4x240xbf16>
    %157 = tpu.concatenate %155, %156 in 1 : vector<4x16xbf16>, vector<4x240xbf16> -> vector<4x256xbf16>
    %c0_118 = arith.constant 0 : index
    %c2_119 = arith.constant 2 : index
    %c0_120 = arith.constant 0 : index
    %c0_121 = arith.constant 0 : index
    %158 = vector.load %arg4[%c0_118, %c2_119, %c0_120, %c0_121] : memref<3x3x4x4xbf16, #tpu.memory_space<vmem>>, vector<1x1x4x4xbf16>
    %159 = vector.shape_cast %158 : vector<1x1x4x4xbf16> to vector<4x4xbf16>
    %cst_122 = arith.constant dense<0.000000e+00> : vector<4x256xf32>
    %160 = tpu.matmul %159, %157, %cst_122 {dimension_numbers = #tpu.dot_dimension_numbers<[1], [0], [0], [1], [0, 0, 1, 1], [], []>} : vector<4x4xbf16>, vector<4x256xbf16>, vector<4x256xf32> -> vector<4x256xf32>
    %c1_123 = arith.constant 1 : index
    %c2_124 = arith.constant 2 : index
    %c0_125 = arith.constant 0 : index
    %c0_126 = arith.constant 0 : index
    %161 = vector.load %arg4[%c1_123, %c2_124, %c0_125, %c0_126] : memref<3x3x4x4xbf16, #tpu.memory_space<vmem>>, vector<1x1x4x4xbf16>
    %162 = vector.shape_cast %161 : vector<1x1x4x4xbf16> to vector<4x4xbf16>
    %cst_127 = arith.constant dense<0.000000e+00> : vector<4x256xf32>
    %163 = tpu.matmul %162, %154, %cst_127 {dimension_numbers = #tpu.dot_dimension_numbers<[1], [0], [0], [1], [0, 0, 1, 1], [], []>} : vector<4x4xbf16>, vector<4x256xbf16>, vector<4x256xf32> -> vector<4x256xf32>
    %164 = arith.addf %160, %163 : vector<4x256xf32>
    %cst_128 = arith.constant 0.000000e+00 : bf16
    %165 = vector.broadcast %cst_128 : bf16 to vector<4x16xbf16>
    %166 = vector.extract_strided_slice %154 {offsets = [0, 16], sizes = [4, 240], strides = [1, 1]} : vector<4x256xbf16> to vector<4x240xbf16>
    %167 = tpu.concatenate %166, %165 in 1 : vector<4x240xbf16>, vector<4x16xbf16> -> vector<4x256xbf16>
    %c2_129 = arith.constant 2 : index
    %c2_130 = arith.constant 2 : index
    %c0_131 = arith.constant 0 : index
    %c0_132 = arith.constant 0 : index
    %168 = vector.load %arg4[%c2_129, %c2_130, %c0_131, %c0_132] : memref<3x3x4x4xbf16, #tpu.memory_space<vmem>>, vector<1x1x4x4xbf16>
    %169 = vector.shape_cast %168 : vector<1x1x4x4xbf16> to vector<4x4xbf16>
    %cst_133 = arith.constant dense<0.000000e+00> : vector<4x256xf32>
    %170 = tpu.matmul %169, %167, %cst_133 {dimension_numbers = #tpu.dot_dimension_numbers<[1], [0], [0], [1], [0, 0, 1, 1], [], []>} : vector<4x4xbf16>, vector<4x256xbf16>, vector<4x256xf32> -> vector<4x256xf32>
    %171 = arith.addf %164, %170 : vector<4x256xf32>
    %c0_134 = arith.constant 0 : index
    %c0_135 = arith.constant 0 : index
    %172 = vector.load %arg7[%c0_134, %c0_135] : memref<4x256xf32, #tpu.memory_space<vmem>>, vector<4x256xf32>
    %173 = arith.addf %172, %171 : vector<4x256xf32>
    %c0_136 = arith.constant 0 : index
    %c0_137 = arith.constant 0 : index
    %174 = vector.load %arg7[%c0_136, %c0_137] : memref<4x256xf32, #tpu.memory_space<vmem>>, vector<4x256xf32>
    tpu.vector_store %arg7[%c0_136, %c0_137], %173 {strides = array<i32>} : memref<4x256xf32, #tpu.memory_space<vmem>>, vector<4x256xf32>,
    %c0_138 = arith.constant 0 : index
    %c0_139 = arith.constant 0 : index
    %175 = vector.load %arg7[%c0_138, %c0_139] : memref<4x256xf32, #tpu.memory_space<vmem>>, vector<4x256xf32>
    %c0_140 = arith.constant 0 : index
    %c0_141 = arith.constant 0 : index
    %176 = vector.load %arg5[%c0_140, %c0_141] : memref<4x1xf32, #tpu.memory_space<vmem>>, vector<4x1xf32>
    %177 = vector.broadcast %176 : vector<4x1xf32> to vector<4x256xf32>
    %178 = arith.addf %175, %177 : vector<4x256xf32>
    %179 = arith.addf %178, %22 : vector<4x256xf32>
    %cst_142 = arith.constant 0.000000e+00 : f32
    %180 = vector.broadcast %cst_142 : f32 to vector<4x256xf32>
    %181 = arith.maximumf %179, %180 : vector<4x256xf32>
    %c0_143 = arith.constant 0 : index
    %c0_144 = arith.constant 0 : index
    %c0_145 = arith.constant 0 : index
    %182 = vector.load %arg6[%c0_143, %c0_144, %c0_145] : memref<1x4x256xf32, #tpu.memory_space<vmem>>, vector<1x4x256xf32>
    %183 = vector.shape_cast %182 : vector<1x4x256xf32> to vector<4x256xf32>
    %184 = vector.shape_cast %181 : vector<4x256xf32> to vector<1x4x256xf32>
    tpu.vector_store %arg6[%c0_143, %c0_144, %c0_145], %184 {strides = array<i32>} : memref<1x4x256xf32, #tpu.memory_space<vmem>>, vector<1x4x256xf32>,
    return
  }
  func.func @transform_0(%arg0: i32) -> (i32, i32, i32) {
    %c0_i32 = arith.constant 0 : i32
    %c0_i32_0 = arith.constant 0 : i32
    %c0_i32_1 = arith.constant 0 : i32
    return %arg0, %c0_i32, %c0_i32_0 : i32, i32, i32
  }
  func.func @transform_1(%arg0: i32) -> (i32, i32, i32, i32) {
    %c0_i32 = arith.constant 0 : i32
    %c0_i32_0 = arith.constant 0 : i32
    %c0_i32_1 = arith.constant 0 : i32
    %c0_i32_2 = arith.constant 0 : i32
    %c0_i32_3 = arith.constant 0 : i32
    return %c0_i32, %c0_i32_0, %c0_i32_1, %c0_i32_2 : i32, i32, i32, i32
  }
  func.func @transform_2(%arg0: i32) -> (i32, i32) {
    %c0_i32 = arith.constant 0 : i32
    %c0_i32_0 = arith.constant 0 : i32
    %c0_i32_1 = arith.constant 0 : i32
    return %c0_i32, %c0_i32_0 : i32, i32
  }
  func.func @transform_3(%arg0: i32) -> (i32, i32, i32, i32) {
    %c0_i32 = arith.constant 0 : i32
    %c0_i32_0 = arith.constant 0 : i32
    %c0_i32_1 = arith.constant 0 : i32
    %c0_i32_2 = arith.constant 0 : i32
    %c0_i32_3 = arith.constant 0 : i32
    return %c0_i32, %c0_i32_0, %c0_i32_1, %c0_i32_2 : i32, i32, i32, i32
  }
  func.func @transform_4(%arg0: i32) -> (i32, i32) {
    %c0_i32 = arith.constant 0 : i32
    %c0_i32_0 = arith.constant 0 : i32
    %c0_i32_1 = arith.constant 0 : i32
    return %c0_i32, %c0_i32_0 : i32, i32
  }
  func.func @transform_5(%arg0: i32) -> (i32, i32, i32) {
    %c0_i32 = arith.constant 0 : i32
    %c0_i32_0 = arith.constant 0 : i32
    %c0_i32_1 = arith.constant 0 : i32
    return %arg0, %c0_i32, %c0_i32_0 : i32, i32, i32
  }
}

</mosaic_0001>

<llo_original>
// kernel: tpu_custom_call.1
$region0: #{tpu_custom_call.1}
  #allocation0 [shape = 'u32[]', space=smem, size = 0x4, offset = 0x4, fixed_abs, tag = 'smem constant byte address 0x4 - core index']
  #allocation1 [shape = 'u32[144,128]{1,0:T(1,128)}', space=vmem, size = 0x12000, scoped, tag = 'internal scratch']
  #allocation2 [shape = 'f32[4,256]{1,0:T(4,128)}', space=vmem, size = 0x1000, scoped, tag = 'scratch operand']
  %s0 = inlined_call_operand.hbm [shape: f32[2,4,256], index: 0, kind: input, shape index: {}]
  %s1 = inlined_call_operand.hbm [shape: bf16[3,3,4,4], index: 1, kind: input, shape index: {}]
  %s2 = inlined_call_operand.vmem [shape: f32[4,1], index: 2, kind: input, shape index: {}]
  %s3 = inlined_call_operand.vmem [shape: bf16[3,3,4,4], index: 3, kind: input, shape index: {}]
  %s4 = inlined_call_operand.vmem [shape: f32[4,1], index: 4, kind: input, shape index: {}]
  %s5 = inlined_call_operand.hbm [shape: f32[2,4,256], index: 5, kind: output, shape index: {}]
  %s6 = sld [smem:[#allocation0]]
  $region61: #{tpu_custom_call.1} parent=0
    _
  %s8 = ssub.s32 1, %s6
  %s9 = scalar_select 0, %s8, %s6
  $region1: #{tpu_custom_call.1} parent=0
    #allocation3 [shape = 'u8[8192]{0}', space=vmem, size = 0x2000, scoped, tag = 'input window, operand 0']
    #allocation4 [shape = 's32[2]{0}', space=sflag, size = 0x8, scoped, tag = 'scoped memory for tpu_custom_call.1']
    #allocation5 [shape = 's32[2]{0}', space=sflag, size = 0x8, scoped, tag = 'scoped memory for tpu_custom_call.1']
    #allocation6 [shape = 'u8[9216]{0}', space=vmem, size = 0x2400, scoped, tag = 'input window, operand 1, single buffered']
    #allocation7 [shape = 's32[1]{0}', space=sflag, size = 0x4, scoped, tag = 'scoped memory for tpu_custom_call.1']
    #allocation8 [shape = 'u8[8192]{0}', space=vmem, size = 0x2000, scoped, tag = 'output window, operand 0']
    %10 = vsyncpa [#allocation4], 0
    %s11 = scalar_lea.sflag [#allocation4], 1
    %12 = vsyncpa %s11, 0
    %13 = vsyncpa [#allocation7], 0
    %14 = vsyncpa [#allocation5], 0
    %s15 = scalar_lea.sflag [#allocation5], 1
    %16 = vsyncpa %s15, 0
    loop: start=0, step=1, limit=4
    $region2: #{tpu_custom_call.1} parent=1 // loop_pre_header
      _
    $region3: #{tpu_custom_call.1} parent=1 // loop_header
      %s18 = sphi 0, %s22
      %p19 = scmp.ge.s32.totalorder %s18, 4
      %s28 = sphi 0, %s30
      %s31 = sphi 0, %s28
      %s32 = sphi 0, %s31
      %s48 = sphi 0, %s32
      %s52 = sphi 0, %s52
      %s54 = sphi 0, %s52
      %s55 = sphi 0, %s54
      %s69 = sphi 0, %s55
      %s73 = sphi 0, %s73
      %s75 = sphi 0, %s73
      %s76 = sphi 0, %s75
      %s90 = sphi 0, %s76
      %s94 = sphi 0, %s94
      %s96 = sphi 0, %s94
      %s97 = sphi 0, %s96
      %s111 = sphi 0, %s97
      %s115 = sphi 0, %s115
      %s117 = sphi 0, %s115
      %s118 = sphi 0, %s117
      %s132 = sphi 0, %s118
      %s138 = sphi 0, %s140
      %s141 = sphi 0, %s138
      %s142 = sphi 0, %s141
      %s158 = sphi 0, %s142
    $region4: #{tpu_custom_call.1} parent=1 // loop_header_branch
      %21 = sbr.rel (%p19) target = $region8
    $region5: #{tpu_custom_call.1} parent=1 // loop_body
      %s23 = ssub.s32 %s18, 1
      %s24 = ssub.s32 %s18, 2
      %s25 = sadd.s32 %s18, 1
      %s26 = ssub.s32 %s18, %s25
      %p27 = scmp.eq.s32.totalorder %s26, 0
      %s29 = sadd.s32 %s28, 1
      %s30 = scalar_select %p27, %s28, %s29
      %p33 = pneg %p27
      %p34 = scmp.eq.s32.totalorder %s18, 1
      %p35 = por %p33, %p34
      %p36 = scmp.ne.s32.totalorder %s28, %s31
      %p37 = scmp.eq.s32.totalorder %s18, 0
      %p38 = por %p36, %p37
      %p39 = scmp.ne.s32.totalorder %s28, %s31
      %p40 = scmp.eq.s32.totalorder %s23, 1
      %p41 = por %p39, %p40
      %p42 = scmp.ne.s32.totalorder %s31, %s32
      %p43 = scmp.eq.s32.totalorder %s23, 0
      %p44 = por %p42, %p43
      %p45 = scmp.ne.s32.totalorder %s31, %s32
      %p46 = scmp.eq.s32.totalorder %s24, 1
      %p47 = por %p45, %p46
      %p49 = scmp.ne.s32.totalorder %s32, %s48
      %p50 = scmp.eq.s32.totalorder %s24, 0
      %p51 = por %p49, %p50
      %s53 = sadd.s32 %s52, 1
      %p56 = scmp.eq.s32.totalorder %s18, 1
      %p57 = scmp.ne.s32.totalorder %s52, %s54
      %p58 = scmp.eq.s32.totalorder %s18, 0
      %p59 = por %p57, %p58
      %p60 = scmp.ne.s32.totalorder %s52, %s54
      %p61 = scmp.eq.s32.totalorder %s23, 1
      %p62 = por %p60, %p61
      %p63 = scmp.ne.s32.totalorder %s54, %s55
      %p64 = scmp.eq.s32.totalorder %s23, 0
      %p65 = por %p63, %p64
      %p66 = scmp.ne.s32.totalorder %s54, %s55
      %p67 = scmp.eq.s32.totalorder %s24, 1
      %p68 = por %p66, %p67
      %p70 = scmp.ne.s32.totalorder %s55, %s69
      %p71 = scmp.eq.s32.totalorder %s24, 0
      %p72 = por %p70, %p71
      %s74 = sadd.s32 %s73, 1
      %p77 = scmp.eq.s32.totalorder %s18, 1
      %p78 = scmp.ne.s32.totalorder %s73, %s75
      %p79 = scmp.eq.s32.totalorder %s18, 0
      %p80 = por %p78, %p79
      %p81 = scmp.ne.s32.totalorder %s73, %s75
      %p82 = scmp.eq.s32.totalorder %s23, 1
      %p83 = por %p81, %p82
      %p84 = scmp.ne.s32.totalorder %s75, %s76
      %p85 = scmp.eq.s32.totalorder %s23, 0
      %p86 = por %p84, %p85
      %p87 = scmp.ne.s32.totalorder %s75, %s76
      %p88 = scmp.eq.s32.totalorder %s24, 1
      %p89 = por %p87, %p88
      %p91 = scmp.ne.s32.totalorder %s76, %s90
      %p92 = scmp.eq.s32.totalorder %s24, 0
      %p93 = por %p91, %p92
      %s95 = sadd.s32 %s94, 1
      %p98 = scmp.eq.s32.totalorder %s18, 1
      %p99 = scmp.ne.s32.totalorder %s94, %s96
      %p100 = scmp.eq.s32.totalorder %s18, 0
      %p101 = por %p99, %p100
      %p102 = scmp.ne.s32.totalorder %s94, %s96
      %p103 = scmp.eq.s32.totalorder %s23, 1
      %p104 = por %p102, %p103
      %p105 = scmp.ne.s32.totalorder %s96, %s97
      %p106 = scmp.eq.s32.totalorder %s23, 0
      %p107 = por %p105, %p106
      %p108 = scmp.ne.s32.totalorder %s96, %s97
      %p109 = scmp.eq.s32.totalorder %s24, 1
      %p110 = por %p108, %p109
      %p112 = scmp.ne.s32.totalorder %s97, %s111
      %p113 = scmp.eq.s32.totalorder %s24, 0
      %p114 = por %p112, %p113
      %s116 = sadd.s32 %s115, 1
      %p119 = scmp.eq.s32.totalorder %s18, 1
      %p120 = scmp.ne.s32.totalorder %s115, %s117
      %p121 = scmp.eq.s32.totalorder %s18, 0
      %p122 = por %p120, %p121
      %p123 = scmp.ne.s32.totalorder %s115, %s117
      %p124 = scmp.eq.s32.totalorder %s23, 1
      %p125 = por %p123, %p124
      %p126 = scmp.ne.s32.totalorder %s117, %s118
      %p127 = scmp.eq.s32.totalorder %s23, 0
      %p128 = por %p126, %p127
      %p129 = scmp.ne.s32.totalorder %s117, %s118
      %p130 = scmp.eq.s32.totalorder %s24, 1
      %p131 = por %p129, %p130
      %p133 = scmp.ne.s32.totalorder %s118, %s132
      %p134 = scmp.eq.s32.totalorder %s24, 0
      %p135 = por %p133, %p134
      %s136 = ssub.s32 %s18, %s25
      %p137 = scmp.eq.s32.totalorder %s136, 0
      %s139 = sadd.s32 %s138, 1
      %s140 = scalar_select %p137, %s138, %s139
      %p143 = pneg %p137
      %p144 = scmp.eq.s32.totalorder %s18, 1
      %p145 = por %p143, %p144
      %p146 = scmp.ne.s32.totalorder %s138, %s141
      %p147 = scmp.eq.s32.totalorder %s18, 0
      %p148 = por %p146, %p147
      %p149 = scmp.ne.s32.totalorder %s138, %s141
      %p150 = scmp.eq.s32.totalorder %s23, 1
      %p151 = por %p149, %p150
      %p152 = scmp.ne.s32.totalorder %s141, %s142
      %p153 = scmp.eq.s32.totalorder %s23, 0
      %p154 = por %p152, %p153
      %p155 = scmp.ne.s32.totalorder %s141, %s142
      %p156 = scmp.eq.s32.totalorder %s24, 1
      %p157 = por %p155, %p156
      %p159 = scmp.ne.s32.totalorder %s142, %s158
      %p160 = scmp.eq.s32.totalorder %s24, 0
      %p161 = por %p159, %p160
      %p162 = scmp.le.s32.totalorder 1, %s18
      %p163 = scmp.lt.s32.totalorder %s18, 3
      %p164 = pnand %p162, %p163
      %p165 = pneg %p164
      // Predicated region
      $region9: #{tpu_custom_call.1} parent=5 // pred_check
        _
      $region10: #{tpu_custom_call.1} parent=5 // pred_check_branch
        %167 = sbr.rel (%p164) target = $region12
      $region11: #{tpu_custom_call.1} parent=5 // pred_region
        %s168 = ssub.s32 %s18, 1
        // Predicated region
        $region13: #{tpu_custom_call.1} parent=11 // pred_check
          %p169 = pneg %p65
        $region14: #{tpu_custom_call.1} parent=11 // pred_check_branch
          %171 = sbr.rel (%p169) target = $region16
        $region15: #{tpu_custom_call.1} parent=11 // pred_region
          %s173 = ssub.s32 288, 288
          %174 = vsyncadd [#allocation7], %s173
          %s175 = sshll.u32 [#allocation6], 4
          %s176 = int_to_ptr.vmem [resolvable:$true] %s175
          %181 = dma.hbm_to_vmem [thread:$0]  %s1, 288, %s176, [#allocation7], 32, 32, 2
        $region16: #{tpu_custom_call.1} parent=11 // pred_fallthru
          _
        // Predicated region
        $region17: #{tpu_custom_call.1} parent=11 // pred_check
          %p182 = pneg %p86
        $region18: #{tpu_custom_call.1} parent=11 // pred_check_branch
          %184 = sbr.rel (%p182) target = $region20
        $region19: #{tpu_custom_call.1} parent=11 // pred_region
          _
        $region20: #{tpu_custom_call.1} parent=11 // pred_fallthru
          _
        // Predicated region
        $region21: #{tpu_custom_call.1} parent=11 // pred_check
          %p185 = pneg %p107
        $region22: #{tpu_custom_call.1} parent=11 // pred_check_branch
          %187 = sbr.rel (%p185) target = $region24
        $region23: #{tpu_custom_call.1} parent=11 // pred_region
          _
        $region24: #{tpu_custom_call.1} parent=11 // pred_fallthru
          _
        // Predicated region
        $region25: #{tpu_custom_call.1} parent=11 // pred_check
          %p188 = pneg %p128
        $region26: #{tpu_custom_call.1} parent=11 // pred_check_branch
          %190 = sbr.rel (%p188) target = $region28
        $region27: #{tpu_custom_call.1} parent=11 // pred_region
          _
        $region28: #{tpu_custom_call.1} parent=11 // pred_fallthru
          _
      $region12: #{tpu_custom_call.1} parent=5 // pred_fallthru
        _
      %p191 = scmp.lt.s32.totalorder %s18, 2
      // Predicated region
      $region29: #{tpu_custom_call.1} parent=5 // pred_check
        %p192 = pneg %p191
      $region30: #{tpu_custom_call.1} parent=5 // pred_check_branch
        %194 = sbr.rel (%p192) target = $region32
      $region31: #{tpu_custom_call.1} parent=5 // pred_region
        // Predicated region
        $region33: #{tpu_custom_call.1} parent=31 // pred_check
          %p195 = pneg %p38
        $region34: #{tpu_custom_call.1} parent=31 // pred_check_branch
          %197 = sbr.rel (%p195) target = $region36
        $region35: #{tpu_custom_call.1} parent=31 // pred_region
          %s198 = sand.u32 %s28, 1
          %s199 = scalar_lea.sflag [#allocation4], %s198
          %s200 = sand.u32 %s28, 1
          %s201 = smul.addr %s200, 8
          %s202 = scalar_lea.vmem [#allocation3], %s201
          %s204 = ssub.s32 128, 128
          %205 = vsyncadd %s199, %s204
          %s206 = smul.addr %s18, 2
          %s207 = smul.addr %s206, 64
          %s208 = scalar_lea.hbm %s0, %s207
          %s210 = sshll.u32 %s202, 4
          %s211 = int_to_ptr.vmem [resolvable:$true] %s210
          %213 = dma.hbm_to_vmem [thread:$0]  %s208, 128, %s211, %s199
        $region36: #{tpu_custom_call.1} parent=31 // pred_fallthru
          _
      $region32: #{tpu_custom_call.1} parent=5 // pred_fallthru
        _
      %p214 = scmp.le.s32.totalorder 1, %s18
      %p215 = scmp.lt.s32.totalorder %s18, 3
      %p216 = pnand %p214, %p215
      %p217 = pneg %p216
      // Predicated region
      $region37: #{tpu_custom_call.1} parent=5 // pred_check
        _
      $region38: #{tpu_custom_call.1} parent=5 // pred_check_branch
        %219 = sbr.rel (%p216) target = $region40
      $region39: #{tpu_custom_call.1} parent=5 // pred_region
        %s220 = ssub.s32 %s18, 1
        %s221 = sand.u32 %s31, 1
        %s222 = scalar_lea.sflag [#allocation4], %s221
        %s223 = sand.u32 %s31, 1
        %s224 = smul.addr %s223, 8
        %s225 = scalar_lea.vmem [#allocation3], %s224
        // Predicated region
        $region41: #{tpu_custom_call.1} parent=39 // pred_check
          %p226 = pneg %p44
        $region42: #{tpu_custom_call.1} parent=39 // pred_check_branch
          %228 = sbr.rel (%p226) target = $region44
        $region43: #{tpu_custom_call.1} parent=39 // pred_region
          %229 = dma.done %s222, 128
        $region44: #{tpu_custom_call.1} parent=39 // pred_fallthru
          _
        // Predicated region
        $region45: #{tpu_custom_call.1} parent=39 // pred_check
          %p230 = pneg %p65
        $region46: #{tpu_custom_call.1} parent=39 // pred_check_branch
          %232 = sbr.rel (%p230) target = $region48
        $region47: #{tpu_custom_call.1} parent=39 // pred_region
          %233 = dma.done [#allocation7], 288
        $region48: #{tpu_custom_call.1} parent=39 // pred_fallthru
          _
        %s234 = sand.u32 %s31, 1
        %s235 = scalar_lea.sflag [#allocation4], %s234
        %s236 = sand.u32 %s31, 1
        %s237 = smul.addr %s236, 8
        %s238 = scalar_lea.vmem [#allocation3], %s237
        %p239 = pneg %p44
        %p240 = pneg %p41
        %p241 = pneg %p65
        %p242 = pneg %p62
        %p243 = pneg %p86
        %p244 = pneg %p83
        %p245 = pneg %p107
        %p246 = pneg %p104
        %p247 = pneg %p128
        %p248 = pneg %p125
        %p249 = pneg %p154
        %p250 = pneg %p151
        %s251 = sand.u32 %s141, 1
        %s252 = scalar_lea.sflag [#allocation5], %s251
        %s253 = sand.u32 %s141, 1
        %s254 = smul.addr %s253, 8
        %s255 = scalar_lea.vmem [#allocation8], %s254
        %v259 = vlaneseq
        %v260 = vand.u32 %v259, 127
        %v261 = vadd.s32 %v260, 128
        %vm262 = vcmp.lt.s32.totalorder %v260, 0
        %v263 = vsub.s32 0, %v260
        %v264 = vsel %vm262, %v263, %v260
        %v265 = vshrl.u32 %v264, 4
        %v266 = vand.u32 %v264, 15
        %v267 = vsub.s32 0, %v266
        %v268 = vsel %vm262, %v267, %v266
        %vm269 = vcmp.lt.s32.totalorder %v261, 0
        %v270 = vsub.s32 0, %v261
        %v271 = vsel %vm269, %v270, %v261
        %v272 = vshrl.u32 %v271, 4
        %v273 = vand.u32 %v271, 15
        %v274 = vsub.s32 0, %v273
        %v275 = vsel %vm269, %v274, %v273
        %vm276 = vcmp.ne.s32.totalorder %v268, 0
        %vm277 = vcmp.ne.s32.totalorder %v275, 0
        %vm278 = vcmp.lt.s32.totalorder %v268, 0
        %vm279 = vcmp.lt.s32.totalorder %v275, 0
        %vm280 = vmand %vm278, %vm276
        %vm281 = vmand %vm279, %vm277
        %v282 = vadd.s32 %v268, 16
        %v283 = vadd.s32 %v275, 16
        %v284 = vsel %vm280, %v282, %v268
        %v285 = vsel %vm281, %v283, %v275
        %vm286 = vcmp.ge.s32.totalorder %v284, 1
        %vm287 = vcmp.ge.s32.totalorder %v285, 1
        %vm288 = vcmp.le.s32.totalorder %v284, 14
        %vm289 = vcmp.le.s32.totalorder %v285, 14
        %v290 = vld [vmem:[%s225] sm:$0xff]
        %v292 = vcombine.high %v290, %v290
        %v294 = vpack.c.bf16 %v290, %v290
        %v295 = vpack.c.bf16 %v292, %v292
        %298 = vrot.lane.b32.xlu0 %v294, 1
        %v299 = vpop.permute.xlu0 %298
        %300 = vrot.lane.b32.xlu0 %v295, 1
        %v301 = vpop.permute.xlu0 %300
        %vm302 = vcmask 7168
        %v303 = vsel %vm302, %v299, %v301
        %vm305 = vcmask 7168
        %v308 = vsel %vm305, 0, %v299
        %v310 = vsel %vm286, 1, 0
        %v311 = vsel %vm287, 1, 0
        %vm312 = vcmp.eq.s32.totalorder %v310, 1
        %vm313 = vcmp.eq.s32.totalorder %v311, 1
        %vm314 = vmpackc.low %vm313, %vm312
        %v315 = vsel %vm314, 65537, 0
        %v316 = vlaneseq
        %v317 = vshrl.u32 %v316, 7
        %v318 = vsub.s32 0, %v317
        %v319 = vrot.slane %v315, %v318
        %v320 = vlaneseq
        %v321 = vshrl.u32 %v320, 7
        %v322 = vsub.s32 4, %v321
        %v323 = vrot.slane %v315, %v322
        %vm324 = vcmp.ne.s16.totalorder %v319, 0
        %vm325 = vcmp.ne.s16.totalorder %v323, 0
        %v326 = vsel %vm324, %v308, 0
        %v327 = vsel %vm325, %v303, 0
        %330 = vrot.lane.b32.xlu0 %v326, 16
        %v331 = vpop.permute.xlu0 %330
        %332 = vrot.lane.b32.xlu0 %v327, 16
        %v333 = vpop.permute.xlu0 %332
        %vm334 = vcmask 130048
        %v335 = vsel %vm334, %v331, %v333
        %vm336 = vcmask 130048
        %v338 = vsel %vm336, 0, %v331
        %v339 = vld [vmem:[#allocation6] sm:$0x3]
        %s340 = scalar_lea.vmem [#allocation6], 6
        %v341 = vld [vmem:[%s340] sm:$0x3]
        %vm342 = vcmask 31744
        %v344 = vsel %vm342, %v341, 0
        %vm346 = vcmask 1041408
        %v348 = vsel %vm346, %v326, 0
        %v351 = vsel %vm346, %v327, 0
        %353 = vmatprep.subr.bf16.mxu0 %v351
        %354 = vmatpush1.bf16.msra.mxu0 %v348
        %355 = vmatprep.subr.bf16.mxu0 0
        %356 = vmatpush1.bf16.msra.mxu0 0
        %357 = vmatprep.subr.bf16.mxu0 0
        %358 = vmatpush1.bf16.msra.mxu0 0
        %359 = vmatprep.subr.bf16.mxu0 0
        %360 = vmatpush1.bf16.msra.mxu0 0
        %361 = vmatprep.subr.bf16.mxu0 0
        %362 = vmatpush1.bf16.msra.mxu0 0
        %363 = vmatprep.subr.bf16.mxu0 0
        %364 = vmatpush1.bf16.msra.mxu0 0
        %365 = vmatprep.subr.bf16.mxu0 0
        %366 = vmatpush1.bf16.msra.mxu0 0
        %367 = vmatprep.subr.bf16.mxu0 0
        %368 = vmatpush1.bf16.msra.mxu0 0
        %369 = vmatprep.subr.bf16.mxu0 0
        %370 = vmatpush1.bf16.msra.mxu0 0
        %371 = vmatprep.subr.bf16.mxu0 0
        %372 = vmatpush1.bf16.msra.mxu0 0
        %373 = vmatprep.subr.bf16.mxu0 0
        %374 = vmatpush1.bf16.msra.mxu0 0
        %375 = vmatprep.subr.bf16.mxu0 0
        %376 = vmatpush1.bf16.msra.mxu0 0
        %377 = vmatprep.subr.bf16.mxu0 0
        %378 = vmatpush1.bf16.msra.mxu0 0
        %379 = vmatprep.subr.bf16.mxu0 0
        %380 = vmatpush1.bf16.msra.mxu0 0
        %381 = vmatprep.subr.bf16.mxu0 0
        %382 = vmatpush1.bf16.msra.mxu0 0
        %383 = vmatprep.subr.bf16.mxu0 0
        %384 = vmatpush1.bf16.msra.mxu0 0
        %385 = vmatprep.mubr.bf16.mxu0 0
        %386 = vmatmul.mubr.bf16.gmra.mrb[0].mxu0 %v344
        %v387 = vpop.f32.mrb[0].mxu0
        %v388 = vadd.f32 0.0, %v387
        %v389 = vpop.f32.mrb[0].mxu0
        %v390 = vadd.f32 0.0, %v389
        %v391 = vpop.f32.mrb[0].mxu0
        %v392 = vpop.f32.mrb[0].mxu0
        %393 = vdwg.mxu0
        %v395 = vsel %vm342, %v339, 0
        %v397 = vsel %vm346, %v338, 0
        %v400 = vsel %vm346, %v335, 0
        %402 = vmatprep.subr.bf16.mxu0 %v400
        %403 = vmatpush1.bf16.msra.mxu0 %v397
        %404 = vmatprep.subr.bf16.mxu0 0
        %405 = vmatpush1.bf16.msra.mxu0 0
        %406 = vmatprep.subr.bf16.mxu0 0
        %407 = vmatpush1.bf16.msra.mxu0 0
        %408 = vmatprep.subr.bf16.mxu0 0
        %409 = vmatpush1.bf16.msra.mxu0 0
        %410 = vmatprep.subr.bf16.mxu0 0
        %411 = vmatpush1.bf16.msra.mxu0 0
        %412 = vmatprep.subr.bf16.mxu0 0
        %413 = vmatpush1.bf16.msra.mxu0 0
        %414 = vmatprep.subr.bf16.mxu0 0
        %415 = vmatpush1.bf16.msra.mxu0 0
        %416 = vmatprep.subr.bf16.mxu0 0
        %417 = vmatpush1.bf16.msra.mxu0 0
        %418 = vmatprep.subr.bf16.mxu0 0
        %419 = vmatpush1.bf16.msra.mxu0 0
        %420 = vmatprep.subr.bf16.mxu0 0
        %421 = vmatpush1.bf16.msra.mxu0 0
        %422 = vmatprep.subr.bf16.mxu0 0
        %423 = vmatpush1.bf16.msra.mxu0 0
        %424 = vmatprep.subr.bf16.mxu0 0
        %425 = vmatpush1.bf16.msra.mxu0 0
        %426 = vmatprep.subr.bf16.mxu0 0
        %427 = vmatpush1.bf16.msra.mxu0 0
        %428 = vmatprep.subr.bf16.mxu0 0
        %429 = vmatpush1.bf16.msra.mxu0 0
        %430 = vmatprep.subr.bf16.mxu0 0
        %431 = vmatpush1.bf16.msra.mxu0 0
        %432 = vmatprep.subr.bf16.mxu0 0
        %433 = vmatpush1.bf16.msra.mxu0 0
        %434 = vmatprep.mubr.bf16.mxu0 0
        %435 = vmatmul.mubr.bf16.gmra.mrb[0].mxu0 %v395
        %v436 = vpop.f32.mrb[0].mxu0
        %v437 = vadd.f32 %v388, %v436
        %v438 = vpop.f32.mrb[0].mxu0
        %v439 = vadd.f32 %v390, %v438
        %v440 = vpop.f32.mrb[0].mxu0
        %v441 = vpop.f32.mrb[0].mxu0
        %442 = vdwg.mxu0
        %443 = vrot.lane.b32.xlu0 %v326, 112
        %v444 = vpop.permute.xlu0 %443
        %445 = vrot.lane.b32.xlu0 %v327, 112
        %v446 = vpop.permute.xlu0 %445
        %vm447 = vcmask 916480
        %v448 = vsel %vm447, %v444, %v446
        %vm449 = vcmask 916480
        %v451 = vsel %vm449, %v446, 0
        %s452 = scalar_lea.vmem [#allocation6], 12
        %v453 = vld [vmem:[%s452] sm:$0x3]
        %v455 = vsel %vm342, %v453, 0
        %v458 = vsel %vm346, %v448, 0
        %v460 = vsel %vm346, %v451, 0
        %462 = vmatprep.subr.bf16.mxu0 %v460
        %463 = vmatpush1.bf16.msra.mxu0 %v458
        %464 = vmatprep.subr.bf16.mxu0 0
        %465 = vmatpush1.bf16.msra.mxu0 0
        %466 = vmatprep.subr.bf16.mxu0 0
        %467 = vmatpush1.bf16.msra.mxu0 0
        %468 = vmatprep.subr.bf16.mxu0 0
        %469 = vmatpush1.bf16.msra.mxu0 0
        %470 = vmatprep.subr.bf16.mxu0 0
        %471 = vmatpush1.bf16.msra.mxu0 0
        %472 = vmatprep.subr.bf16.mxu0 0
        %473 = vmatpush1.bf16.msra.mxu0 0
        %474 = vmatprep.subr.bf16.mxu0 0
        %475 = vmatpush1.bf16.msra.mxu0 0
        %476 = vmatprep.subr.bf16.mxu0 0
        %477 = vmatpush1.bf16.msra.mxu0 0
        %478 = vmatprep.subr.bf16.mxu0 0
        %479 = vmatpush1.bf16.msra.mxu0 0
        %480 = vmatprep.subr.bf16.mxu0 0
        %481 = vmatpush1.bf16.msra.mxu0 0
        %482 = vmatprep.subr.bf16.mxu0 0
        %483 = vmatpush1.bf16.msra.mxu0 0
        %484 = vmatprep.subr.bf16.mxu0 0
        %485 = vmatpush1.bf16.msra.mxu0 0
        %486 = vmatprep.subr.bf16.mxu0 0
        %487 = vmatpush1.bf16.msra.mxu0 0
        %488 = vmatprep.subr.bf16.mxu0 0
        %489 = vmatpush1.bf16.msra.mxu0 0
        %490 = vmatprep.subr.bf16.mxu0 0
        %491 = vmatpush1.bf16.msra.mxu0 0
        %492 = vmatprep.subr.bf16.mxu0 0
        %493 = vmatpush1.bf16.msra.mxu0 0
        %494 = vmatprep.mubr.bf16.mxu0 0
        %495 = vmatmul.mubr.bf16.gmra.mrb[0].mxu0 %v455
        %v496 = vpop.f32.mrb[0].mxu0
        %v497 = vadd.f32 0.0, %v496
        %v498 = vpop.f32.mrb[0].mxu0
        %v499 = vadd.f32 0.0, %v498
        %v500 = vpop.f32.mrb[0].mxu0
        %v501 = vpop.f32.mrb[0].mxu0
        %502 = vdwg.mxu0
        %v503 = vadd.f32 %v437, %v497
        %v504 = vadd.f32 %v439, %v499
        %v507 = vcombine.low %v503, %v504
        %509 = vst [vmem:[#allocation2] sm:$0xff] %v507
        %510 = vrot.lane.b32.xlu0 %v294, 16
        %v511 = vpop.permute.xlu0 %510
        %512 = vrot.lane.b32.xlu0 %v295, 16
        %v513 = vpop.permute.xlu0 %512
        %v514 = vsel %vm334, %v511, %v513
        %v516 = vsel %vm336, 0, %v511
        %s517 = scalar_lea.vmem [#allocation6], 2
        %v518 = vld [vmem:[%s517] sm:$0x3]
        %s519 = scalar_lea.vmem [#allocation6], 8
        %v520 = vld [vmem:[%s519] sm:$0x3]
        %v522 = vsel %vm342, %v520, 0
        %v525 = vsel %vm346, %v294, 0
        %v528 = vsel %vm346, %v295, 0
        %530 = vmatprep.subr.bf16.mxu0 %v528
        %531 = vmatpush1.bf16.msra.mxu0 %v525
        %532 = vmatprep.subr.bf16.mxu0 0
        %533 = vmatpush1.bf16.msra.mxu0 0
        %534 = vmatprep.subr.bf16.mxu0 0
        %535 = vmatpush1.bf16.msra.mxu0 0
        %536 = vmatprep.subr.bf16.mxu0 0
        %537 = vmatpush1.bf16.msra.mxu0 0
        %538 = vmatprep.subr.bf16.mxu0 0
        %539 = vmatpush1.bf16.msra.mxu0 0
        %540 = vmatprep.subr.bf16.mxu0 0
        %541 = vmatpush1.bf16.msra.mxu0 0
        %542 = vmatprep.subr.bf16.mxu0 0
        %543 = vmatpush1.bf16.msra.mxu0 0
        %544 = vmatprep.subr.bf16.mxu0 0
        %545 = vmatpush1.bf16.msra.mxu0 0
        %546 = vmatprep.subr.bf16.mxu0 0
        %547 = vmatpush1.bf16.msra.mxu0 0
        %548 = vmatprep.subr.bf16.mxu0 0
        %549 = vmatpush1.bf16.msra.mxu0 0
        %550 = vmatprep.subr.bf16.mxu0 0
        %551 = vmatpush1.bf16.msra.mxu0 0
        %552 = vmatprep.subr.bf16.mxu0 0
        %553 = vmatpush1.bf16.msra.mxu0 0
        %554 = vmatprep.subr.bf16.mxu0 0
        %555 = vmatpush1.bf16.msra.mxu0 0
        %556 = vmatprep.subr.bf16.mxu0 0
        %557 = vmatpush1.bf16.msra.mxu0 0
        %558 = vmatprep.subr.bf16.mxu0 0
        %559 = vmatpush1.bf16.msra.mxu0 0
        %560 = vmatprep.subr.bf16.mxu0 0
        %561 = vmatpush1.bf16.msra.mxu0 0
        %562 = vmatprep.mubr.bf16.mxu0 0
        %563 = vmatmul.mubr.bf16.gmra.mrb[0].mxu0 %v522
        %v564 = vpop.f32.mrb[0].mxu0
        %v565 = vadd.f32 0.0, %v564
        %v566 = vpop.f32.mrb[0].mxu0
        %v567 = vadd.f32 0.0, %v566
        %v568 = vpop.f32.mrb[0].mxu0
        %v569 = vpop.f32.mrb[0].mxu0
        %570 = vdwg.mxu0
        %v572 = vsel %vm342, %v518, 0
        %v574 = vsel %vm346, %v516, 0
        %v577 = vsel %vm346, %v514, 0
        %579 = vmatprep.subr.bf16.mxu0 %v577
        %580 = vmatpush1.bf16.msra.mxu0 %v574
        %581 = vmatprep.subr.bf16.mxu0 0
        %582 = vmatpush1.bf16.msra.mxu0 0
        %583 = vmatprep.subr.bf16.mxu0 0
        %584 = vmatpush1.bf16.msra.mxu0 0
        %585 = vmatprep.subr.bf16.mxu0 0
        %586 = vmatpush1.bf16.msra.mxu0 0
        %587 = vmatprep.subr.bf16.mxu0 0
        %588 = vmatpush1.bf16.msra.mxu0 0
        %589 = vmatprep.subr.bf16.mxu0 0
        %590 = vmatpush1.bf16.msra.mxu0 0
        %591 = vmatprep.subr.bf16.mxu0 0
        %592 = vmatpush1.bf16.msra.mxu0 0
        %593 = vmatprep.subr.bf16.mxu0 0
        %594 = vmatpush1.bf16.msra.mxu0 0
        %595 = vmatprep.subr.bf16.mxu0 0
        %596 = vmatpush1.bf16.msra.mxu0 0
        %597 = vmatprep.subr.bf16.mxu0 0
        %598 = vmatpush1.bf16.msra.mxu0 0
        %599 = vmatprep.subr.bf16.mxu0 0
        %600 = vmatpush1.bf16.msra.mxu0 0
        %601 = vmatprep.subr.bf16.mxu0 0
        %602 = vmatpush1.bf16.msra.mxu0 0
        %603 = vmatprep.subr.bf16.mxu0 0
        %604 = vmatpush1.bf16.msra.mxu0 0
        %605 = vmatprep.subr.bf16.mxu0 0
        %606 = vmatpush1.bf16.msra.mxu0 0
        %607 = vmatprep.subr.bf16.mxu0 0
        %608 = vmatpush1.bf16.msra.mxu0 0
        %609 = vmatprep.subr.bf16.mxu0 0
        %610 = vmatpush1.bf16.msra.mxu0 0
        %611 = vmatprep.mubr.bf16.mxu0 0
        %612 = vmatmul.mubr.bf16.gmra.mrb[0].mxu0 %v572
        %v613 = vpop.f32.mrb[0].mxu0
        %v614 = vadd.f32 %v565, %v613
        %v615 = vpop.f32.mrb[0].mxu0
        %v616 = vadd.f32 %v567, %v615
        %v617 = vpop.f32.mrb[0].mxu0
        %v618 = vpop.f32.mrb[0].mxu0
        %619 = vdwg.mxu0
        %620 = vrot.lane.b32.xlu0 %v294, 112
        %v621 = vpop.permute.xlu0 %620
        %622 = vrot.lane.b32.xlu0 %v295, 112
        %v623 = vpop.permute.xlu0 %622
        %v624 = vsel %vm447, %v621, %v623
        %v626 = vsel %vm449, %v623, 0
        %s627 = scalar_lea.vmem [#allocation6], 14
        %v628 = vld [vmem:[%s627] sm:$0x3]
        %v630 = vsel %vm342, %v628, 0
        %v633 = vsel %vm346, %v624, 0
        %v635 = vsel %vm346, %v626, 0
        %637 = vmatprep.subr.bf16.mxu0 %v635
        %638 = vmatpush1.bf16.msra.mxu0 %v633
        %639 = vmatprep.subr.bf16.mxu0 0
        %640 = vmatpush1.bf16.msra.mxu0 0
        %641 = vmatprep.subr.bf16.mxu0 0
        %642 = vmatpush1.bf16.msra.mxu0 0
        %643 = vmatprep.subr.bf16.mxu0 0
        %644 = vmatpush1.bf16.msra.mxu0 0
        %645 = vmatprep.subr.bf16.mxu0 0
        %646 = vmatpush1.bf16.msra.mxu0 0
        %647 = vmatprep.subr.bf16.mxu0 0
        %648 = vmatpush1.bf16.msra.mxu0 0
        %649 = vmatprep.subr.bf16.mxu0 0
        %650 = vmatpush1.bf16.msra.mxu0 0
        %651 = vmatprep.subr.bf16.mxu0 0
        %652 = vmatpush1.bf16.msra.mxu0 0
        %653 = vmatprep.subr.bf16.mxu0 0
        %654 = vmatpush1.bf16.msra.mxu0 0
        %655 = vmatprep.subr.bf16.mxu0 0
        %656 = vmatpush1.bf16.msra.mxu0 0
        %657 = vmatprep.subr.bf16.mxu0 0
        %658 = vmatpush1.bf16.msra.mxu0 0
        %659 = vmatprep.subr.bf16.mxu0 0
        %660 = vmatpush1.bf16.msra.mxu0 0
        %661 = vmatprep.subr.bf16.mxu0 0
        %662 = vmatpush1.bf16.msra.mxu0 0
        %663 = vmatprep.subr.bf16.mxu0 0
        %664 = vmatpush1.bf16.msra.mxu0 0
        %665 = vmatprep.subr.bf16.mxu0 0
        %666 = vmatpush1.bf16.msra.mxu0 0
        %667 = vmatprep.subr.bf16.mxu0 0
        %668 = vmatpush1.bf16.msra.mxu0 0
        %669 = vmatprep.mubr.bf16.mxu0 0
        %670 = vmatmul.mubr.bf16.gmra.mrb[0].mxu0 %v630
        %v671 = vpop.f32.mrb[0].mxu0
        %v672 = vadd.f32 0.0, %v671
        %v673 = vpop.f32.mrb[0].mxu0
        %v674 = vadd.f32 0.0, %v673
        %v675 = vpop.f32.mrb[0].mxu0
        %v676 = vpop.f32.mrb[0].mxu0
        %677 = vdwg.mxu0
        %v678 = vadd.f32 %v614, %v672
        %v679 = vadd.f32 %v616, %v674
        %v680 = vld [vmem:[#allocation2] sm:$0xff]
        %v683 = vcombine.low %v678, %v679
        %v685 = vadd.f32 %v680, %v683
        %686 = vst [vmem:[#allocation2] sm:$0xff] %v685
        %687 = vrot.lane.b32.xlu0 %v294, 127
        %v688 = vpop.permute.xlu0 %687
        %689 = vrot.lane.b32.xlu0 %v295, 127
        %v690 = vpop.permute.xlu0 %689
        %vm691 = vcmask 1039360
        %v692 = vsel %vm691, %v688, %v690
        %vm694 = vcmask 1039360
        %v696 = vsel %vm694, %v690, 0
        %v698 = vsel %vm288, 1, 0
        %v699 = vsel %vm289, 1, 0
        %vm700 = vcmp.eq.s32.totalorder %v698, 1
        %vm701 = vcmp.eq.s32.totalorder %v699, 1
        %vm702 = vmpackc.low %vm701, %vm700
        %v703 = vsel %vm702, 65537, 0
        %v704 = vlaneseq
        %v705 = vshrl.u32 %v704, 7
        %v706 = vsub.s32 0, %v705
        %v707 = vrot.slane %v703, %v706
        %v708 = vlaneseq
        %v709 = vshrl.u32 %v708, 7
        %v710 = vsub.s32 4, %v709
        %v711 = vrot.slane %v703, %v710
        %vm712 = vcmp.ne.s16.totalorder %v707, 0
        %vm713 = vcmp.ne.s16.totalorder %v711, 0
        %v714 = vsel %vm712, %v692, 0
        %v715 = vsel %vm713, %v696, 0
        %718 = vrot.lane.b32.xlu0 %v714, 16
        %v719 = vpop.permute.xlu0 %718
        %720 = vrot.lane.b32.xlu0 %v715, 16
        %v721 = vpop.permute.xlu0 %720
        %v722 = vsel %vm334, %v719, %v721
        %v724 = vsel %vm336, 0, %v719
        %s725 = scalar_lea.vmem [#allocation6], 4
        %v726 = vld [vmem:[%s725] sm:$0x3]
        %s727 = scalar_lea.vmem [#allocation6], 10
        %v728 = vld [vmem:[%s727] sm:$0x3]
        %v730 = vsel %vm342, %v728, 0
        %v733 = vsel %vm346, %v714, 0
        %v736 = vsel %vm346, %v715, 0
        %738 = vmatprep.subr.bf16.mxu0 %v736
        %739 = vmatpush1.bf16.msra.mxu0 %v733
        %740 = vmatprep.subr.bf16.mxu0 0
        %741 = vmatpush1.bf16.msra.mxu0 0
        %742 = vmatprep.subr.bf16.mxu0 0
        %743 = vmatpush1.bf16.msra.mxu0 0
        %744 = vmatprep.subr.bf16.mxu0 0
        %745 = vmatpush1.bf16.msra.mxu0 0
        %746 = vmatprep.subr.bf16.mxu0 0
        %747 = vmatpush1.bf16.msra.mxu0 0
        %748 = vmatprep.subr.bf16.mxu0 0
        %749 = vmatpush1.bf16.msra.mxu0 0
        %750 = vmatprep.subr.bf16.mxu0 0
        %751 = vmatpush1.bf16.msra.mxu0 0
        %752 = vmatprep.subr.bf16.mxu0 0
        %753 = vmatpush1.bf16.msra.mxu0 0
        %754 = vmatprep.subr.bf16.mxu0 0
        %755 = vmatpush1.bf16.msra.mxu0 0
        %756 = vmatprep.subr.bf16.mxu0 0
        %757 = vmatpush1.bf16.msra.mxu0 0
        %758 = vmatprep.subr.bf16.mxu0 0
        %759 = vmatpush1.bf16.msra.mxu0 0
        %760 = vmatprep.subr.bf16.mxu0 0
        %761 = vmatpush1.bf16.msra.mxu0 0
        %762 = vmatprep.subr.bf16.mxu0 0
        %763 = vmatpush1.bf16.msra.mxu0 0
        %764 = vmatprep.subr.bf16.mxu0 0
        %765 = vmatpush1.bf16.msra.mxu0 0
        %766 = vmatprep.subr.bf16.mxu0 0
        %767 = vmatpush1.bf16.msra.mxu0 0
        %768 = vmatprep.subr.bf16.mxu0 0
        %769 = vmatpush1.bf16.msra.mxu0 0
        %770 = vmatprep.mubr.bf16.mxu0 0
        %771 = vmatmul.mubr.bf16.gmra.mrb[0].mxu0 %v730
        %v772 = vpop.f32.mrb[0].mxu0
        %v773 = vadd.f32 0.0, %v772
        %v774 = vpop.f32.mrb[0].mxu0
        %v775 = vadd.f32 0.0, %v774
        %v776 = vpop.f32.mrb[0].mxu0
        %v777 = vpop.f32.mrb[0].mxu0
        %778 = vdwg.mxu0
        %v780 = vsel %vm342, %v726, 0
        %v782 = vsel %vm346, %v724, 0
        %v785 = vsel %vm346, %v722, 0
        %787 = vmatprep.subr.bf16.mxu0 %v785
        %788 = vmatpush1.bf16.msra.mxu0 %v782
        %789 = vmatprep.subr.bf16.mxu0 0
        %790 = vmatpush1.bf16.msra.mxu0 0
        %791 = vmatprep.subr.bf16.mxu0 0
        %792 = vmatpush1.bf16.msra.mxu0 0
        %793 = vmatprep.subr.bf16.mxu0 0
        %794 = vmatpush1.bf16.msra.mxu0 0
        %795 = vmatprep.subr.bf16.mxu0 0
        %796 = vmatpush1.bf16.msra.mxu0 0
        %797 = vmatprep.subr.bf16.mxu0 0
        %798 = vmatpush1.bf16.msra.mxu0 0
        %799 = vmatprep.subr.bf16.mxu0 0
        %800 = vmatpush1.bf16.msra.mxu0 0
        %801 = vmatprep.subr.bf16.mxu0 0
        %802 = vmatpush1.bf16.msra.mxu0 0
        %803 = vmatprep.subr.bf16.mxu0 0
        %804 = vmatpush1.bf16.msra.mxu0 0
        %805 = vmatprep.subr.bf16.mxu0 0
        %806 = vmatpush1.bf16.msra.mxu0 0
        %807 = vmatprep.subr.bf16.mxu0 0
        %808 = vmatpush1.bf16.msra.mxu0 0
        %809 = vmatprep.subr.bf16.mxu0 0
        %810 = vmatpush1.bf16.msra.mxu0 0
        %811 = vmatprep.subr.bf16.mxu0 0
        %812 = vmatpush1.bf16.msra.mxu0 0
        %813 = vmatprep.subr.bf16.mxu0 0
        %814 = vmatpush1.bf16.msra.mxu0 0
        %815 = vmatprep.subr.bf16.mxu0 0
        %816 = vmatpush1.bf16.msra.mxu0 0
        %817 = vmatprep.subr.bf16.mxu0 0
        %818 = vmatpush1.bf16.msra.mxu0 0
        %819 = vmatprep.mubr.bf16.mxu0 0
        %820 = vmatmul.mubr.bf16.gmra.mrb[0].mxu0 %v780
        %v821 = vpop.f32.mrb[0].mxu0
        %v822 = vadd.f32 %v773, %v821
        %v823 = vpop.f32.mrb[0].mxu0
        %v824 = vadd.f32 %v775, %v823
        %v825 = vpop.f32.mrb[0].mxu0
        %v826 = vpop.f32.mrb[0].mxu0
        %827 = vdwg.mxu0
        %828 = vrot.lane.b32.xlu0 %v714, 112
        %v829 = vpop.permute.xlu0 %828
        %830 = vrot.lane.b32.xlu0 %v715, 112
        %v831 = vpop.permute.xlu0 %830
        %v832 = vsel %vm447, %v829, %v831
        %v834 = vsel %vm449, %v831, 0
        %s835 = scalar_lea.vmem [#allocation6], 16
        %v836 = vld [vmem:[%s835] sm:$0x3]
        %v838 = vsel %vm342, %v836, 0
        %v841 = vsel %vm346, %v832, 0
        %v843 = vsel %vm346, %v834, 0
        %845 = vmatprep.subr.bf16.mxu0 %v843
        %846 = vmatpush1.bf16.msra.mxu0 %v841
        %847 = vmatprep.subr.bf16.mxu0 0
        %848 = vmatpush1.bf16.msra.mxu0 0
        %849 = vmatprep.subr.bf16.mxu0 0
        %850 = vmatpush1.bf16.msra.mxu0 0
        %851 = vmatprep.subr.bf16.mxu0 0
        %852 = vmatpush1.bf16.msra.mxu0 0
        %853 = vmatprep.subr.bf16.mxu0 0
        %854 = vmatpush1.bf16.msra.mxu0 0
        %855 = vmatprep.subr.bf16.mxu0 0
        %856 = vmatpush1.bf16.msra.mxu0 0
        %857 = vmatprep.subr.bf16.mxu0 0
        %858 = vmatpush1.bf16.msra.mxu0 0
        %859 = vmatprep.subr.bf16.mxu0 0
        %860 = vmatpush1.bf16.msra.mxu0 0
        %861 = vmatprep.subr.bf16.mxu0 0
        %862 = vmatpush1.bf16.msra.mxu0 0
        %863 = vmatprep.subr.bf16.mxu0 0
        %864 = vmatpush1.bf16.msra.mxu0 0
        %865 = vmatprep.subr.bf16.mxu0 0
        %866 = vmatpush1.bf16.msra.mxu0 0
        %867 = vmatprep.subr.bf16.mxu0 0
        %868 = vmatpush1.bf16.msra.mxu0 0
        %869 = vmatprep.subr.bf16.mxu0 0
        %870 = vmatpush1.bf16.msra.mxu0 0
        %871 = vmatprep.subr.bf16.mxu0 0
        %872 = vmatpush1.bf16.msra.mxu0 0
        %873 = vmatprep.subr.bf16.mxu0 0
        %874 = vmatpush1.bf16.msra.mxu0 0
        %875 = vmatprep.subr.bf16.mxu0 0
        %876 = vmatpush1.bf16.msra.mxu0 0
        %877 = vmatprep.mubr.bf16.mxu0 0
        %878 = vmatmul.mubr.bf16.gmra.mrb[0].mxu0 %v838
        %v879 = vpop.f32.mrb[0].mxu0
        %v880 = vadd.f32 0.0, %v879
        %v881 = vpop.f32.mrb[0].mxu0
        %v882 = vadd.f32 0.0, %v881
        %v883 = vpop.f32.mrb[0].mxu0
        %v884 = vpop.f32.mrb[0].mxu0
        %885 = vdwg.mxu0
        %v886 = vadd.f32 %v822, %v880
        %v887 = vadd.f32 %v824, %v882
        %v888 = vld [vmem:[#allocation2] sm:$0xff]
        %v891 = vcombine.low %v886, %v887
        %v893 = vadd.f32 %v888, %v891
        %894 = vst [vmem:[#allocation2] sm:$0xff] %v893
        %v895 = vld [vmem:[#allocation2] sm:$0xff]
        %v896 = vld [vmem:[%s2] sm:$0xf]
        %898 = vset.pattern.permute.xlu0 0
        %899 = vperm.xlu0 %898, %v896
        %v900 = vpop.permute.xlu0 %899
        %v902 = vunpack.c.l.s4 839922192
        %v903 = vunpack.c.0.s8 %v902
        %v904 = vlaneseq
        %v905 = vshrl.u32 %v904, 7
        %v906 = vsub.s32 %v903, %v905
        %v907 = vrot.slane %v900, %v906
        %v909 = vadd.f32 %v895, %v907
        %v910 = vmax.f32 %v909, 0.0
        %v912 = vcombine.high %v910, %v910
        %v914 = vpack.c.bf16 %v910, %v910
        %v915 = vpack.c.bf16 %v912, %v912
        %918 = vrot.lane.b32.xlu0 %v914, 1
        %v919 = vpop.permute.xlu0 %918
        %920 = vrot.lane.b32.xlu0 %v915, 1
        %v921 = vpop.permute.xlu0 %920
        %v922 = vsel %vm302, %v919, %v921
        %v925 = vsel %vm305, 0, %v919
        %v927 = vsel %vm324, %v925, 0
        %v928 = vsel %vm325, %v922, 0
        %931 = vrot.lane.b32.xlu0 %v927, 16
        %v932 = vpop.permute.xlu0 %931
        %933 = vrot.lane.b32.xlu0 %v928, 16
        %v934 = vpop.permute.xlu0 %933
        %v935 = vsel %vm334, %v932, %v934
        %v937 = vsel %vm336, 0, %v932
        %v938 = vld [vmem:[%s3] sm:$0x3]
        %s939 = scalar_lea.vmem %s3, 6
        %v940 = vld [vmem:[%s939] sm:$0x3]
        %v942 = vsel %vm342, %v940, 0
        %v945 = vsel %vm346, %v927, 0
        %v948 = vsel %vm346, %v928, 0
        %950 = vmatprep.subr.bf16.mxu0 %v948
        %951 = vmatpush1.bf16.msra.mxu0 %v945
        %952 = vmatprep.subr.bf16.mxu0 0
        %953 = vmatpush1.bf16.msra.mxu0 0
        %954 = vmatprep.subr.bf16.mxu0 0
        %955 = vmatpush1.bf16.msra.mxu0 0
        %956 = vmatprep.subr.bf16.mxu0 0
        %957 = vmatpush1.bf16.msra.mxu0 0
        %958 = vmatprep.subr.bf16.mxu0 0
        %959 = vmatpush1.bf16.msra.mxu0 0
        %960 = vmatprep.subr.bf16.mxu0 0
        %961 = vmatpush1.bf16.msra.mxu0 0
        %962 = vmatprep.subr.bf16.mxu0 0
        %963 = vmatpush1.bf16.msra.mxu0 0
        %964 = vmatprep.subr.bf16.mxu0 0
        %965 = vmatpush1.bf16.msra.mxu0 0
        %966 = vmatprep.subr.bf16.mxu0 0
        %967 = vmatpush1.bf16.msra.mxu0 0
        %968 = vmatprep.subr.bf16.mxu0 0
        %969 = vmatpush1.bf16.msra.mxu0 0
        %970 = vmatprep.subr.bf16.mxu0 0
        %971 = vmatpush1.bf16.msra.mxu0 0
        %972 = vmatprep.subr.bf16.mxu0 0
        %973 = vmatpush1.bf16.msra.mxu0 0
        %974 = vmatprep.subr.bf16.mxu0 0
        %975 = vmatpush1.bf16.msra.mxu0 0
        %976 = vmatprep.subr.bf16.mxu0 0
        %977 = vmatpush1.bf16.msra.mxu0 0
        %978 = vmatprep.subr.bf16.mxu0 0
        %979 = vmatpush1.bf16.msra.mxu0 0
        %980 = vmatprep.subr.bf16.mxu0 0
        %981 = vmatpush1.bf16.msra.mxu0 0
        %982 = vmatprep.mubr.bf16.mxu0 0
        %983 = vmatmul.mubr.bf16.gmra.mrb[0].mxu0 %v942
        %v984 = vpop.f32.mrb[0].mxu0
        %v985 = vadd.f32 0.0, %v984
        %v986 = vpop.f32.mrb[0].mxu0
        %v987 = vadd.f32 0.0, %v986
        %v988 = vpop.f32.mrb[0].mxu0
        %v989 = vpop.f32.mrb[0].mxu0
        %990 = vdwg.mxu0
        %v992 = vsel %vm342, %v938, 0
        %v994 = vsel %vm346, %v937, 0
        %v997 = vsel %vm346, %v935, 0
        %999 = vmatprep.subr.bf16.mxu0 %v997
        %1000 = vmatpush1.bf16.msra.mxu0 %v994
        %1001 = vmatprep.subr.bf16.mxu0 0
        %1002 = vmatpush1.bf16.msra.mxu0 0
        %1003 = vmatprep.subr.bf16.mxu0 0
        %1004 = vmatpush1.bf16.msra.mxu0 0
        %1005 = vmatprep.subr.bf16.mxu0 0
        %1006 = vmatpush1.bf16.msra.mxu0 0
        %1007 = vmatprep.subr.bf16.mxu0 0
        %1008 = vmatpush1.bf16.msra.mxu0 0
        %1009 = vmatprep.subr.bf16.mxu0 0
        %1010 = vmatpush1.bf16.msra.mxu0 0
        %1011 = vmatprep.subr.bf16.mxu0 0
        %1012 = vmatpush1.bf16.msra.mxu0 0
        %1013 = vmatprep.subr.bf16.mxu0 0
        %1014 = vmatpush1.bf16.msra.mxu0 0
        %1015 = vmatprep.subr.bf16.mxu0 0
        %1016 = vmatpush1.bf16.msra.mxu0 0
        %1017 = vmatprep.subr.bf16.mxu0 0
        %1018 = vmatpush1.bf16.msra.mxu0 0
        %1019 = vmatprep.subr.bf16.mxu0 0
        %1020 = vmatpush1.bf16.msra.mxu0 0
        %1021 = vmatprep.subr.bf16.mxu0 0
        %1022 = vmatpush1.bf16.msra.mxu0 0
        %1023 = vmatprep.subr.bf16.mxu0 0
        %1024 = vmatpush1.bf16.msra.mxu0 0
        %1025 = vmatprep.subr.bf16.mxu0 0
        %1026 = vmatpush1.bf16.msra.mxu0 0
        %1027 = vmatprep.subr.bf16.mxu0 0
        %1028 = vmatpush1.bf16.msra.mxu0 0
        %1029 = vmatprep.subr.bf16.mxu0 0
        %1030 = vmatpush1.bf16.msra.mxu0 0
        %1031 = vmatprep.mubr.bf16.mxu0 0
        %1032 = vmatmul.mubr.bf16.gmra.mrb[0].mxu0 %v992
        %v1033 = vpop.f32.mrb[0].mxu0
        %v1034 = vadd.f32 %v985, %v1033
        %v1035 = vpop.f32.mrb[0].mxu0
        %v1036 = vadd.f32 %v987, %v1035
        %v1037 = vpop.f32.mrb[0].mxu0
        %v1038 = vpop.f32.mrb[0].mxu0
        %1039 = vdwg.mxu0
        %1040 = vrot.lane.b32.xlu0 %v927, 112
        %v1041 = vpop.permute.xlu0 %1040
        %1042 = vrot.lane.b32.xlu0 %v928, 112
        %v1043 = vpop.permute.xlu0 %1042
        %v1044 = vsel %vm447, %v1041, %v1043
        %v1046 = vsel %vm449, %v1043, 0
        %s1047 = scalar_lea.vmem %s3, 12
        %v1048 = vld [vmem:[%s1047] sm:$0x3]
        %v1050 = vsel %vm342, %v1048, 0
        %v1053 = vsel %vm346, %v1044, 0
        %v1055 = vsel %vm346, %v1046, 0
        %1057 = vmatprep.subr.bf16.mxu0 %v1055
        %1058 = vmatpush1.bf16.msra.mxu0 %v1053
        %1059 = vmatprep.subr.bf16.mxu0 0
        %1060 = vmatpush1.bf16.msra.mxu0 0
        %1061 = vmatprep.subr.bf16.mxu0 0
        %1062 = vmatpush1.bf16.msra.mxu0 0
        %1063 = vmatprep.subr.bf16.mxu0 0
        %1064 = vmatpush1.bf16.msra.mxu0 0
        %1065 = vmatprep.subr.bf16.mxu0 0
        %1066 = vmatpush1.bf16.msra.mxu0 0
        %1067 = vmatprep.subr.bf16.mxu0 0
        %1068 = vmatpush1.bf16.msra.mxu0 0
        %1069 = vmatprep.subr.bf16.mxu0 0
        %1070 = vmatpush1.bf16.msra.mxu0 0
        %1071 = vmatprep.subr.bf16.mxu0 0
        %1072 = vmatpush1.bf16.msra.mxu0 0
        %1073 = vmatprep.subr.bf16.mxu0 0
        %1074 = vmatpush1.bf16.msra.mxu0 0
        %1075 = vmatprep.subr.bf16.mxu0 0
        %1076 = vmatpush1.bf16.msra.mxu0 0
        %1077 = vmatprep.subr.bf16.mxu0 0
        %1078 = vmatpush1.bf16.msra.mxu0 0
        %1079 = vmatprep.subr.bf16.mxu0 0
        %1080 = vmatpush1.bf16.msra.mxu0 0
        %1081 = vmatprep.subr.bf16.mxu0 0
        %1082 = vmatpush1.bf16.msra.mxu0 0
        %1083 = vmatprep.subr.bf16.mxu0 0
        %1084 = vmatpush1.bf16.msra.mxu0 0
        %1085 = vmatprep.subr.bf16.mxu0 0
        %1086 = vmatpush1.bf16.msra.mxu0 0
        %1087 = vmatprep.subr.bf16.mxu0 0
        %1088 = vmatpush1.bf16.msra.mxu0 0
        %1089 = vmatprep.mubr.bf16.mxu0 0
        %1090 = vmatmul.mubr.bf16.gmra.mrb[0].mxu0 %v1050
        %v1091 = vpop.f32.mrb[0].mxu0
        %v1092 = vadd.f32 0.0, %v1091
        %v1093 = vpop.f32.mrb[0].mxu0
        %v1094 = vadd.f32 0.0, %v1093
        %v1095 = vpop.f32.mrb[0].mxu0
        %v1096 = vpop.f32.mrb[0].mxu0
        %1097 = vdwg.mxu0
        %v1098 = vadd.f32 %v1034, %v1092
        %v1099 = vadd.f32 %v1036, %v1094
        %v1102 = vcombine.low %v1098, %v1099
        %1104 = vst [vmem:[#allocation2] sm:$0xff] %v1102
        %1105 = vrot.lane.b32.xlu0 %v914, 16
        %v1106 = vpop.permute.xlu0 %1105
        %1107 = vrot.lane.b32.xlu0 %v915, 16
        %v1108 = vpop.permute.xlu0 %1107
        %v1109 = vsel %vm334, %v1106, %v1108
        %v1111 = vsel %vm336, 0, %v1106
        %s1112 = scalar_lea.vmem %s3, 2
        %v1113 = vld [vmem:[%s1112] sm:$0x3]
        %s1114 = scalar_lea.vmem %s3, 8
        %v1115 = vld [vmem:[%s1114] sm:$0x3]
        %v1117 = vsel %vm342, %v1115, 0
        %v1120 = vsel %vm346, %v914, 0
        %v1123 = vsel %vm346, %v915, 0
        %1125 = vmatprep.subr.bf16.mxu0 %v1123
        %1126 = vmatpush1.bf16.msra.mxu0 %v1120
        %1127 = vmatprep.subr.bf16.mxu0 0
        %1128 = vmatpush1.bf16.msra.mxu0 0
        %1129 = vmatprep.subr.bf16.mxu0 0
        %1130 = vmatpush1.bf16.msra.mxu0 0
        %1131 = vmatprep.subr.bf16.mxu0 0
        %1132 = vmatpush1.bf16.msra.mxu0 0
        %1133 = vmatprep.subr.bf16.mxu0 0
        %1134 = vmatpush1.bf16.msra.mxu0 0
        %1135 = vmatprep.subr.bf16.mxu0 0
        %1136 = vmatpush1.bf16.msra.mxu0 0
        %1137 = vmatprep.subr.bf16.mxu0 0
        %1138 = vmatpush1.bf16.msra.mxu0 0
        %1139 = vmatprep.subr.bf16.mxu0 0
        %1140 = vmatpush1.bf16.msra.mxu0 0
        %1141 = vmatprep.subr.bf16.mxu0 0
        %1142 = vmatpush1.bf16.msra.mxu0 0
        %1143 = vmatprep.subr.bf16.mxu0 0
        %1144 = vmatpush1.bf16.msra.mxu0 0
        %1145 = vmatprep.subr.bf16.mxu0 0
        %1146 = vmatpush1.bf16.msra.mxu0 0
        %1147 = vmatprep.subr.bf16.mxu0 0
        %1148 = vmatpush1.bf16.msra.mxu0 0
        %1149 = vmatprep.subr.bf16.mxu0 0
        %1150 = vmatpush1.bf16.msra.mxu0 0
        %1151 = vmatprep.subr.bf16.mxu0 0
        %1152 = vmatpush1.bf16.msra.mxu0 0
        %1153 = vmatprep.subr.bf16.mxu0 0
        %1154 = vmatpush1.bf16.msra.mxu0 0
        %1155 = vmatprep.subr.bf16.mxu0 0
        %1156 = vmatpush1.bf16.msra.mxu0 0
        %1157 = vmatprep.mubr.bf16.mxu0 0
        %1158 = vmatmul.mubr.bf16.gmra.mrb[0].mxu0 %v1117
        %v1159 = vpop.f32.mrb[0].mxu0
        %v1160 = vadd.f32 0.0, %v1159
        %v1161 = vpop.f32.mrb[0].mxu0
        %v1162 = vadd.f32 0.0, %v1161
        %v1163 = vpop.f32.mrb[0].mxu0
        %v1164 = vpop.f32.mrb[0].mxu0
        %1165 = vdwg.mxu0
        %v1167 = vsel %vm342, %v1113, 0
        %v1169 = vsel %vm346, %v1111, 0
        %v1172 = vsel %vm346, %v1109, 0
        %1174 = vmatprep.subr.bf16.mxu0 %v1172
        %1175 = vmatpush1.bf16.msra.mxu0 %v1169
        %1176 = vmatprep.subr.bf16.mxu0 0
        %1177 = vmatpush1.bf16.msra.mxu0 0
        %1178 = vmatprep.subr.bf16.mxu0 0
        %1179 = vmatpush1.bf16.msra.mxu0 0
        %1180 = vmatprep.subr.bf16.mxu0 0
        %1181 = vmatpush1.bf16.msra.mxu0 0
        %1182 = vmatprep.subr.bf16.mxu0 0
        %1183 = vmatpush1.bf16.msra.mxu0 0
        %1184 = vmatprep.subr.bf16.mxu0 0
        %1185 = vmatpush1.bf16.msra.mxu0 0
        %1186 = vmatprep.subr.bf16.mxu0 0
        %1187 = vmatpush1.bf16.msra.mxu0 0
        %1188 = vmatprep.subr.bf16.mxu0 0
        %1189 = vmatpush1.bf16.msra.mxu0 0
        %1190 = vmatprep.subr.bf16.mxu0 0
        %1191 = vmatpush1.bf16.msra.mxu0 0
        %1192 = vmatprep.subr.bf16.mxu0 0
        %1193 = vmatpush1.bf16.msra.mxu0 0
        %1194 = vmatprep.subr.bf16.mxu0 0
        %1195 = vmatpush1.bf16.msra.mxu0 0
        %1196 = vmatprep.subr.bf16.mxu0 0
        %1197 = vmatpush1.bf16.msra.mxu0 0
        %1198 = vmatprep.subr.bf16.mxu0 0
        %1199 = vmatpush1.bf16.msra.mxu0 0
        %1200 = vmatprep.subr.bf16.mxu0 0
        %1201 = vmatpush1.bf16.msra.mxu0 0
        %1202 = vmatprep.subr.bf16.mxu0 0
        %1203 = vmatpush1.bf16.msra.mxu0 0
        %1204 = vmatprep.subr.bf16.mxu0 0
        %1205 = vmatpush1.bf16.msra.mxu0 0
        %1206 = vmatprep.mubr.bf16.mxu0 0
        %1207 = vmatmul.mubr.bf16.gmra.mrb[0].mxu0 %v1167
        %v1208 = vpop.f32.mrb[0].mxu0
        %v1209 = vadd.f32 %v1160, %v1208
        %v1210 = vpop.f32.mrb[0].mxu0
        %v1211 = vadd.f32 %v1162, %v1210
        %v1212 = vpop.f32.mrb[0].mxu0
        %v1213 = vpop.f32.mrb[0].mxu0
        %1214 = vdwg.mxu0
        %1215 = vrot.lane.b32.xlu0 %v914, 112
        %v1216 = vpop.permute.xlu0 %1215
        %1217 = vrot.lane.b32.xlu0 %v915, 112
        %v1218 = vpop.permute.xlu0 %1217
        %v1219 = vsel %vm447, %v1216, %v1218
        %v1221 = vsel %vm449, %v1218, 0
        %s1222 = scalar_lea.vmem %s3, 14
        %v1223 = vld [vmem:[%s1222] sm:$0x3]
        %v1225 = vsel %vm342, %v1223, 0
        %v1228 = vsel %vm346, %v1219, 0
        %v1230 = vsel %vm346, %v1221, 0
        %1232 = vmatprep.subr.bf16.mxu0 %v1230
        %1233 = vmatpush1.bf16.msra.mxu0 %v1228
        %1234 = vmatprep.subr.bf16.mxu0 0
        %1235 = vmatpush1.bf16.msra.mxu0 0
        %1236 = vmatprep.subr.bf16.mxu0 0
        %1237 = vmatpush1.bf16.msra.mxu0 0
        %1238 = vmatprep.subr.bf16.mxu0 0
        %1239 = vmatpush1.bf16.msra.mxu0 0
        %1240 = vmatprep.subr.bf16.mxu0 0
        %1241 = vmatpush1.bf16.msra.mxu0 0
        %1242 = vmatprep.subr.bf16.mxu0 0
        %1243 = vmatpush1.bf16.msra.mxu0 0
        %1244 = vmatprep.subr.bf16.mxu0 0
        %1245 = vmatpush1.bf16.msra.mxu0 0
        %1246 = vmatprep.subr.bf16.mxu0 0
        %1247 = vmatpush1.bf16.msra.mxu0 0
        %1248 = vmatprep.subr.bf16.mxu0 0
        %1249 = vmatpush1.bf16.msra.mxu0 0
        %1250 = vmatprep.subr.bf16.mxu0 0
        %1251 = vmatpush1.bf16.msra.mxu0 0
        %1252 = vmatprep.subr.bf16.mxu0 0
        %1253 = vmatpush1.bf16.msra.mxu0 0
        %1254 = vmatprep.subr.bf16.mxu0 0
        %1255 = vmatpush1.bf16.msra.mxu0 0
        %1256 = vmatprep.subr.bf16.mxu0 0
        %1257 = vmatpush1.bf16.msra.mxu0 0
        %1258 = vmatprep.subr.bf16.mxu0 0
        %1259 = vmatpush1.bf16.msra.mxu0 0
        %1260 = vmatprep.subr.bf16.mxu0 0
        %1261 = vmatpush1.bf16.msra.mxu0 0
        %1262 = vmatprep.subr.bf16.mxu0 0
        %1263 = vmatpush1.bf16.msra.mxu0 0
        %1264 = vmatprep.mubr.bf16.mxu0 0
        %1265 = vmatmul.mubr.bf16.gmra.mrb[0].mxu0 %v1225
        %v1266 = vpop.f32.mrb[0].mxu0
        %v1267 = vadd.f32 0.0, %v1266
        %v1268 = vpop.f32.mrb[0].mxu0
        %v1269 = vadd.f32 0.0, %v1268
        %v1270 = vpop.f32.mrb[0].mxu0
        %v1271 = vpop.f32.mrb[0].mxu0
        %1272 = vdwg.mxu0
        %v1273 = vadd.f32 %v1209, %v1267
        %v1274 = vadd.f32 %v1211, %v1269
        %v1275 = vld [vmem:[#allocation2] sm:$0xff]
        %v1278 = vcombine.low %v1273, %v1274
        %v1280 = vadd.f32 %v1275, %v1278
        %1281 = vst [vmem:[#allocation2] sm:$0xff] %v1280
        %1282 = vrot.lane.b32.xlu0 %v914, 127
        %v1283 = vpop.permute.xlu0 %1282
        %1284 = vrot.lane.b32.xlu0 %v915, 127
        %v1285 = vpop.permute.xlu0 %1284
        %v1286 = vsel %vm691, %v1283, %v1285
        %v1289 = vsel %vm694, %v1285, 0
        %v1291 = vsel %vm712, %v1286, 0
        %v1292 = vsel %vm713, %v1289, 0
        %1295 = vrot.lane.b32.xlu0 %v1291, 16
        %v1296 = vpop.permute.xlu0 %1295
        %1297 = vrot.lane.b32.xlu0 %v1292, 16
        %v1298 = vpop.permute.xlu0 %1297
        %v1299 = vsel %vm334, %v1296, %v1298
        %v1301 = vsel %vm336, 0, %v1296
        %s1302 = scalar_lea.vmem %s3, 4
        %v1303 = vld [vmem:[%s1302] sm:$0x3]
        %s1304 = scalar_lea.vmem %s3, 10
        %v1305 = vld [vmem:[%s1304] sm:$0x3]
        %v1307 = vsel %vm342, %v1305, 0
        %v1310 = vsel %vm346, %v1291, 0
        %v1313 = vsel %vm346, %v1292, 0
        %1315 = vmatprep.subr.bf16.mxu0 %v1313
        %1316 = vmatpush1.bf16.msra.mxu0 %v1310
        %1317 = vmatprep.subr.bf16.mxu0 0
        %1318 = vmatpush1.bf16.msra.mxu0 0
        %1319 = vmatprep.subr.bf16.mxu0 0
        %1320 = vmatpush1.bf16.msra.mxu0 0
        %1321 = vmatprep.subr.bf16.mxu0 0
        %1322 = vmatpush1.bf16.msra.mxu0 0
        %1323 = vmatprep.subr.bf16.mxu0 0
        %1324 = vmatpush1.bf16.msra.mxu0 0
        %1325 = vmatprep.subr.bf16.mxu0 0
        %1326 = vmatpush1.bf16.msra.mxu0 0
        %1327 = vmatprep.subr.bf16.mxu0 0
        %1328 = vmatpush1.bf16.msra.mxu0 0
        %1329 = vmatprep.subr.bf16.mxu0 0
        %1330 = vmatpush1.bf16.msra.mxu0 0
        %1331 = vmatprep.subr.bf16.mxu0 0
        %1332 = vmatpush1.bf16.msra.mxu0 0
        %1333 = vmatprep.subr.bf16.mxu0 0
        %1334 = vmatpush1.bf16.msra.mxu0 0
        %1335 = vmatprep.subr.bf16.mxu0 0
        %1336 = vmatpush1.bf16.msra.mxu0 0
        %1337 = vmatprep.subr.bf16.mxu0 0
        %1338 = vmatpush1.bf16.msra.mxu0 0
        %1339 = vmatprep.subr.bf16.mxu0 0
        %1340 = vmatpush1.bf16.msra.mxu0 0
        %1341 = vmatprep.subr.bf16.mxu0 0
        %1342 = vmatpush1.bf16.msra.mxu0 0
        %1343 = vmatprep.subr.bf16.mxu0 0
        %1344 = vmatpush1.bf16.msra.mxu0 0
        %1345 = vmatprep.subr.bf16.mxu0 0
        %1346 = vmatpush1.bf16.msra.mxu0 0
        %1347 = vmatprep.mubr.bf16.mxu0 0
        %1348 = vmatmul.mubr.bf16.gmra.mrb[0].mxu0 %v1307
        %v1349 = vpop.f32.mrb[0].mxu0
        %v1350 = vadd.f32 0.0, %v1349
        %v1351 = vpop.f32.mrb[0].mxu0
        %v1352 = vadd.f32 0.0, %v1351
        %v1353 = vpop.f32.mrb[0].mxu0
        %v1354 = vpop.f32.mrb[0].mxu0
        %1355 = vdwg.mxu0
        %v1357 = vsel %vm342, %v1303, 0
        %v1359 = vsel %vm346, %v1301, 0
        %v1362 = vsel %vm346, %v1299, 0
        %1364 = vmatprep.subr.bf16.mxu0 %v1362
        %1365 = vmatpush1.bf16.msra.mxu0 %v1359
        %1366 = vmatprep.subr.bf16.mxu0 0
        %1367 = vmatpush1.bf16.msra.mxu0 0
        %1368 = vmatprep.subr.bf16.mxu0 0
        %1369 = vmatpush1.bf16.msra.mxu0 0
        %1370 = vmatprep.subr.bf16.mxu0 0
        %1371 = vmatpush1.bf16.msra.mxu0 0
        %1372 = vmatprep.subr.bf16.mxu0 0
        %1373 = vmatpush1.bf16.msra.mxu0 0
        %1374 = vmatprep.subr.bf16.mxu0 0
        %1375 = vmatpush1.bf16.msra.mxu0 0
        %1376 = vmatprep.subr.bf16.mxu0 0
        %1377 = vmatpush1.bf16.msra.mxu0 0
        %1378 = vmatprep.subr.bf16.mxu0 0
        %1379 = vmatpush1.bf16.msra.mxu0 0
        %1380 = vmatprep.subr.bf16.mxu0 0
        %1381 = vmatpush1.bf16.msra.mxu0 0
        %1382 = vmatprep.subr.bf16.mxu0 0
        %1383 = vmatpush1.bf16.msra.mxu0 0
        %1384 = vmatprep.subr.bf16.mxu0 0
        %1385 = vmatpush1.bf16.msra.mxu0 0
        %1386 = vmatprep.subr.bf16.mxu0 0
        %1387 = vmatpush1.bf16.msra.mxu0 0
        %1388 = vmatprep.subr.bf16.mxu0 0
        %1389 = vmatpush1.bf16.msra.mxu0 0
        %1390 = vmatprep.subr.bf16.mxu0 0
        %1391 = vmatpush1.bf16.msra.mxu0 0
        %1392 = vmatprep.subr.bf16.mxu0 0
        %1393 = vmatpush1.bf16.msra.mxu0 0
        %1394 = vmatprep.subr.bf16.mxu0 0
        %1395 = vmatpush1.bf16.msra.mxu0 0
        %1396 = vmatprep.mubr.bf16.mxu0 0
        %1397 = vmatmul.mubr.bf16.gmra.mrb[0].mxu0 %v1357
        %v1398 = vpop.f32.mrb[0].mxu0
        %v1399 = vadd.f32 %v1350, %v1398
        %v1400 = vpop.f32.mrb[0].mxu0
        %v1401 = vadd.f32 %v1352, %v1400
        %v1402 = vpop.f32.mrb[0].mxu0
        %v1403 = vpop.f32.mrb[0].mxu0
        %1404 = vdwg.mxu0
        %1405 = vrot.lane.b32.xlu0 %v1291, 112
        %v1406 = vpop.permute.xlu0 %1405
        %1407 = vrot.lane.b32.xlu0 %v1292, 112
        %v1408 = vpop.permute.xlu0 %1407
        %v1409 = vsel %vm447, %v1406, %v1408
        %v1411 = vsel %vm449, %v1408, 0
        %s1412 = scalar_lea.vmem %s3, 16
        %v1413 = vld [vmem:[%s1412] sm:$0x3]
        %v1415 = vsel %vm342, %v1413, 0
        %v1418 = vsel %vm346, %v1409, 0
        %v1420 = vsel %vm346, %v1411, 0
        %1422 = vmatprep.subr.bf16.mxu0 %v1420
        %1423 = vmatpush1.bf16.msra.mxu0 %v1418
        %1424 = vmatprep.subr.bf16.mxu0 0
        %1425 = vmatpush1.bf16.msra.mxu0 0
        %1426 = vmatprep.subr.bf16.mxu0 0
        %1427 = vmatpush1.bf16.msra.mxu0 0
        %1428 = vmatprep.subr.bf16.mxu0 0
        %1429 = vmatpush1.bf16.msra.mxu0 0
        %1430 = vmatprep.subr.bf16.mxu0 0
        %1431 = vmatpush1.bf16.msra.mxu0 0
        %1432 = vmatprep.subr.bf16.mxu0 0
        %1433 = vmatpush1.bf16.msra.mxu0 0
        %1434 = vmatprep.subr.bf16.mxu0 0
        %1435 = vmatpush1.bf16.msra.mxu0 0
        %1436 = vmatprep.subr.bf16.mxu0 0
        %1437 = vmatpush1.bf16.msra.mxu0 0
        %1438 = vmatprep.subr.bf16.mxu0 0
        %1439 = vmatpush1.bf16.msra.mxu0 0
        %1440 = vmatprep.subr.bf16.mxu0 0
        %1441 = vmatpush1.bf16.msra.mxu0 0
        %1442 = vmatprep.subr.bf16.mxu0 0
        %1443 = vmatpush1.bf16.msra.mxu0 0
        %1444 = vmatprep.subr.bf16.mxu0 0
        %1445 = vmatpush1.bf16.msra.mxu0 0
        %1446 = vmatprep.subr.bf16.mxu0 0
        %1447 = vmatpush1.bf16.msra.mxu0 0
        %1448 = vmatprep.subr.bf16.mxu0 0
        %1449 = vmatpush1.bf16.msra.mxu0 0
        %1450 = vmatprep.subr.bf16.mxu0 0
        %1451 = vmatpush1.bf16.msra.mxu0 0
        %1452 = vmatprep.subr.bf16.mxu0 0
        %1453 = vmatpush1.bf16.msra.mxu0 0
        %1454 = vmatprep.mubr.bf16.mxu0 0
        %1455 = vmatmul.mubr.bf16.gmra.mrb[0].mxu0 %v1415
        %v1456 = vpop.f32.mrb[0].mxu0
        %v1457 = vadd.f32 0.0, %v1456
        %v1458 = vpop.f32.mrb[0].mxu0
        %v1459 = vadd.f32 0.0, %v1458
        %v1460 = vpop.f32.mrb[0].mxu0
        %v1461 = vpop.f32.mrb[0].mxu0
        %1462 = vdwg.mxu0
        %v1463 = vadd.f32 %v1399, %v1457
        %v1464 = vadd.f32 %v1401, %v1459
        %v1465 = vld [vmem:[#allocation2] sm:$0xff]
        %v1468 = vcombine.low %v1463, %v1464
        %v1470 = vadd.f32 %v1465, %v1468
        %1471 = vst [vmem:[#allocation2] sm:$0xff] %v1470
        %v1472 = vld [vmem:[#allocation2] sm:$0xff]
        %v1473 = vld [vmem:[%s4] sm:$0xf]
        %1475 = vset.pattern.permute.xlu0 0
        %1476 = vperm.xlu0 %1475, %v1473
        %v1477 = vpop.permute.xlu0 %1476
        %v1479 = vunpack.c.l.s4 839922192
        %v1480 = vunpack.c.0.s8 %v1479
        %v1481 = vlaneseq
        %v1482 = vshrl.u32 %v1481, 7
        %v1483 = vsub.s32 %v1480, %v1482
        %v1484 = vrot.slane %v1477, %v1483
        %v1486 = vadd.f32 %v1472, %v1484
        %v1487 = vadd.f32 %v1486, %v290
        %v1488 = vmax.f32 %v1487, 0.0
        %1489 = vst [vmem:[%s255] sm:$0xff] %v1488
        %s1490 = sand.u32 %s141, 1
        %s1491 = scalar_lea.sflag [#allocation5], %s1490
        %s1492 = sand.u32 %s141, 1
        %s1493 = smul.addr %s1492, 8
        %s1494 = scalar_lea.vmem [#allocation8], %s1493
        // Predicated region
        $region49: #{tpu_custom_call.1} parent=39 // pred_check
          %p1495 = pneg %p151
        $region50: #{tpu_custom_call.1} parent=39 // pred_check_branch
          %1497 = sbr.rel (%p1495) target = $region52
        $region51: #{tpu_custom_call.1} parent=39 // pred_region
          %s1499 = ssub.s32 128, 128
          %1500 = vsyncadd %s1491, %s1499
          %s1501 = smul.addr %s23, 2
          %s1502 = smul.addr %s1501, 64
          %s1503 = scalar_lea.hbm %s5, %s1502
          %s1505 = sshll.u32 %s1494, 4
          %s1506 = int_to_ptr.vmem [resolvable:$true] %s1505
          %1508 = dma.vmem_to_hbm [thread:$0]  %s1506, 128, %s1503, %s1491
        $region52: #{tpu_custom_call.1} parent=39 // pred_fallthru
          _
      $region40: #{tpu_custom_call.1} parent=5 // pred_fallthru
        _
      %p1509 = scmp.le.s32.totalorder 2, %s18
      // Predicated region
      $region53: #{tpu_custom_call.1} parent=5 // pred_check
        %p1510 = pneg %p1509
      $region54: #{tpu_custom_call.1} parent=5 // pred_check_branch
        %1512 = sbr.rel (%p1510) target = $region56
      $region55: #{tpu_custom_call.1} parent=5 // pred_region
        %s1513 = ssub.s32 %s18, 2
        // Predicated region
        $region57: #{tpu_custom_call.1} parent=55 // pred_check
          %p1514 = pneg %p157
        $region58: #{tpu_custom_call.1} parent=55 // pred_check_branch
          %1516 = sbr.rel (%p1514) target = $region60
        $region59: #{tpu_custom_call.1} parent=55 // pred_region
          %s1517 = sand.u32 %s142, 1
          %s1518 = scalar_lea.sflag [#allocation5], %s1517
          %s1519 = sand.u32 %s142, 1
          %s1520 = smul.addr %s1519, 8
          %s1521 = scalar_lea.vmem [#allocation8], %s1520
          %1522 = dma.done %s1518, 128
        $region60: #{tpu_custom_call.1} parent=55 // pred_fallthru
          _
      $region56: #{tpu_custom_call.1} parent=5 // pred_fallthru
        _
    $region6: #{tpu_custom_call.1} parent=1 // loop_footer
      %s22 = sadd.s32 1, %s18
    $region7: #{tpu_custom_call.1} parent=1 // loop_footer_branch
      %17 = sbr.rel target = $region3
    $region8: #{tpu_custom_call.1} parent=1 // loop_exit
      _
    %1523 = vsyncpa [#allocation4], 1
    %s1524 = scalar_lea.sflag [#allocation4], 1
    %1525 = vsyncpa %s1524, 1
    %1526 = vsyncpa [#allocation7], 1
    %1527 = vsyncpa [#allocation5], 1
    %s1528 = scalar_lea.sflag [#allocation5], 1
    %1529 = vsyncpa %s1528, 1

</llo_original>
